<compile_context>
chip_gen: v6e
topology: v6e:2x2x1
jax: 0.10.0
libtpu: 0.0.40
codegen_flags: <defaults>
</compile_context>

<pallas_src>
import functools
import math

import numpy as np
import jax
import jax.numpy as jnp
from jax.experimental import pallas as pl
from jax.experimental.pallas import tpu as pltpu

LANE = 128
SUBLANE = 8


# ----------------------------------------------------------------------------
# Fused Pallas kernel: chain of (matmul + bias [+ ReLU]) layers, all in VMEM.
# refs = (x_ref, w0_ref, b0_ref, w1_ref, b1_ref, ..., o_ref)
# ReLU after every layer except the last (decodingLinear2).
# ----------------------------------------------------------------------------
def _fused_forward_kernel(*refs, num_layers):
    x_ref = refs[0]
    o_ref = refs[-1]
    wb_refs = refs[1:-1]

    h = x_ref[...]
    for layer in range(num_layers):
        w_ref = wb_refs[2 * layer]
        b_ref = wb_refs[2 * layer + 1]
        acc = jnp.dot(h.astype(w_ref.dtype), w_ref[...],
                      preferred_element_type=jnp.float32)
        acc = acc + b_ref[...]                      # (1, N) f32 bias broadcast
        if layer < num_layers - 1:
            acc = jnp.maximum(acc, 0.0)             # f32 ReLU epilogue
        h = acc
    o_ref[...] = h.astype(o_ref.dtype)


# ----------------------------------------------------------------------------
# Hardware-gated knobs (computed eagerly, outside any jit trace).
# ----------------------------------------------------------------------------
@functools.lru_cache(maxsize=None)
def _tpu_budget():
    """(max_tile_m, vmem_limit_clamp) — bigger tiles on 128 MiB-VMEM chips."""
    try:
        vmem_bytes = int(pltpu.get_tpu_info().vmem_capacity_bytes)
    except Exception:
        vmem_bytes = 64 << 20                       # conservative (v7x-sized)
    if vmem_bytes >= (100 << 20):                   # v5e / v6e: 128 MiB VMEM
        return 1024, 64 << 20
    return 512, 32 << 20                            # v7x: 64 MiB physical


@functools.lru_cache(maxsize=None)
def _single_buffer_supported():
    """Probe (eagerly, once) whether pipeline_mode=pl.Buffered(1) is accepted."""
    try:
        def k(x_ref, o_ref):
            o_ref[...] = x_ref[...] + 1.0

        spec = pl.BlockSpec((8, 128), lambda i: (0, 0),
                            pipeline_mode=pl.Buffered(1))
        f = pl.pallas_call(
            k,
            out_shape=jax.ShapeDtypeStruct((8, 128), jnp.float32),
            grid=(1,),
            in_specs=[spec],
            out_specs=pl.BlockSpec((8, 128), lambda i: (0, 0)),
        )
        jax.block_until_ready(f(jnp.zeros((8, 128), jnp.float32)))
        return True
    except Exception:
        return False


def _choose_tile_m(M, max_tile_m):
    if M > max_tile_m:
        return max_tile_m
    if M >= 16:
        # >= 2 blocks so ("parallel",) shards the batch across TensorCores on
        # v7x; keep the block sublane-aligned (multiple of 8).  The final
        # partial block (if any) is masked by Pallas.
        tile = ((pl.cdiv(M, 2) + SUBLANE - 1) // SUBLANE) * SUBLANE
        return min(tile, max_tile_m)
    return M                                         # tiny batch: one full block


# ----------------------------------------------------------------------------
# Fused forward over the pre-folded dense layer chain.
# ----------------------------------------------------------------------------
def fused_forward(x_flat, dense_params, *, max_tile_m, vmem_clamp, single_buffer):
    """x_flat: (M, Kin).  dense_params: (W0, b0, W1, b1, ...), Wi oriented (in, out)."""
    num_layers = len(dense_params) // 2
    M, Kin = x_flat.shape
    Nout = dense_params[-2].shape[1]

    tile_m = _choose_tile_m(M, max_tile_m)
    grid = (pl.cdiv(M, tile_m),)

    def const_spec(shape):
        # Grid-invariant operand: fetched once; single-buffer it when supported
        # so weights are not duplicated in VMEM by default double-buffering.
        if single_buffer:
            return pl.BlockSpec(shape, lambda i: (0, 0),
                                pipeline_mode=pl.Buffered(1))
        return pl.BlockSpec(shape, lambda i: (0, 0))

    operands = [x_flat]
    in_specs = [pl.BlockSpec((tile_m, Kin), lambda i: (i, 0))]
    for layer in range(num_layers):
        w = dense_params[2 * layer]
        b = dense_params[2 * layer + 1].reshape(1, -1)
        operands.append(w)
        in_specs.append(const_spec(w.shape))
        operands.append(b)
        in_specs.append(const_spec(b.shape))

    out_specs = pl.BlockSpec((tile_m, Nout), lambda i: (i, 0))

    def nbytes(a):
        return int(np.prod(a.shape)) * jnp.dtype(a.dtype).itemsize

    weight_bytes = sum(nbytes(a) for a in operands[1:])
    io_bytes = tile_m * (Kin * jnp.dtype(x_flat.dtype).itemsize + Nout * 4)
    inter_bytes = tile_m * sum(int(w.shape[1]) for w in operands[1::2]) * 4
    weight_buf = 1 if single_buffer else 2
    vmem_limit = int(min(max(weight_buf * weight_bytes + 2 * io_bytes +
                             inter_bytes + (4 << 20), 16 << 20), vmem_clamp))

    flops = 2 * M * sum(int(w.shape[0]) * int(w.shape[1])
                        for w in operands[1::2])
    bytes_accessed = weight_bytes + nbytes(x_flat) + M * Nout * 4
    cost = pl.CostEstimate(flops=flops, transcendentals=0,
                           bytes_accessed=bytes_accessed)

    return pl.pallas_call(
        functools.partial(_fused_forward_kernel, num_layers=num_layers),
        out_shape=jax.ShapeDtypeStruct((M, Nout), jnp.float32),
        grid=grid,
        in_specs=in_specs,
        out_specs=out_specs,
        compiler_params=pltpu.CompilerParams(
            dimension_semantics=("parallel",),
            vmem_limit_bytes=vmem_limit),
        cost_estimate=cost,
    )(*operands)


def make_forward_fn(position_shape):
    C, D, H, W = position_shape
    max_tile_m, vmem_clamp = _tpu_budget()
    single_buffer = _single_buffer_supported()      # eager probe (outside jit)

    @jax.jit
    def forward(dense_params, x):
        B = x.shape[0]
        # Cast once in the wrapper: bf16 weights -> bf16 MXU operands; the
        # kernel keeps f32 accumulation + f32 bias/ReLU epilogue.
        x_flat = x.reshape(B, -1).astype(dense_params[0].dtype)
        out = fused_forward(x_flat, dense_params,
                            max_tile_m=max_tile_m,
                            vmem_clamp=vmem_clamp,
                            single_buffer=single_buffer)   # (B, C*D*H*W) f32
        return out.reshape(B, C, D, H, W)

    return forward


# ----------------------------------------------------------------------------
# Build-time: unroll Conv3d (PyTorch semantics: NCDHW, zero padding, stride)
# into an equivalent dense matrix on the channel-major flattened activations.
# ----------------------------------------------------------------------------
def conv3d_to_dense(weight, in_shape, stride, padding):
    """weight: (O, C, kd, kh, kw) numpy.  Returns (mat, (Do,Ho,Wo)) such that
    conv3d(x).reshape(B,-1) == x.reshape(B,-1) @ mat  (exact linear algebra)."""
    O, C, kd, kh, kw = weight.shape
    D, H, W = in_shape
    pd, ph, pw = padding
    Do = (D + 2 * pd - kd) // stride + 1
    Ho = (H + 2 * ph - kh) // stride + 1
    Wo = (W + 2 * pw - kw) // stride + 1
    # TODO(synk): gate on mat.nbytes and fall back to an in-kernel shifted-slice
    # conv for large spatial shapes (dense unroll scales as (C*D*H*W)^2).
    mat = np.zeros((C * D * H * W, O * Do * Ho * Wo), dtype=np.float32)
    for o in range(O):
        for zo in range(Do):
            for yo in range(Ho):
                for xo in range(Wo):
                    out_idx = ((o * Do + zo) * Ho + yo) * Wo + xo
                    for kz in range(kd):
                        z = zo * stride + kz - pd
                        if z < 0 or z >= D:
                            continue
                        for ky in range(kh):
                            y = yo * stride + ky - ph
                            if y < 0 or y >= H:
                                continue
                            for kx in range(kw):
                                x = xo * stride + kx - pw
                                if x < 0 or x >= W:
                                    continue
                                in_base = (z * H + y) * W + x
                                for c in range(C):
                                    mat[c * D * H * W + in_base, out_idx] = \
                                        weight[o, c, kz, ky, kx]
    return mat, (Do, Ho, Wo)


# ----------------------------------------------------------------------------
# Net parameters (mirrors Net.__init__).
# ----------------------------------------------------------------------------
def build_net_params(key, position_shape, body_structure, num_latent,
                     zero_padding=True):
    C, D, H, W = position_shape
    prev_shape = (D, H, W)
    in_ch = C
    conv_layers = []
    for spec in body_structure:
        k, out_ch = spec[0], spec[1]
        stride = spec[2] if len(spec) == 3 else 1
        kdim = (min(k, prev_shape[0]), min(k, prev_shape[1]), min(k, prev_shape[2]))
        pad = tuple(kd // 2 for kd in kdim) if zero_padding else (0, 0, 0)
        key, kw_key, kb_key = jax.random.split(key, 3)
        w = 0.1 * jax.random.normal(kw_key, (out_ch, in_ch) + kdim, jnp.float32)
        b = 0.1 * jax.random.normal(kb_key, (out_ch,), jnp.float32)
        conv_layers.append(dict(w=w, b=b, stride=stride, pad=pad,
                                in_shape=prev_shape))
        # actual PyTorch Conv3d output shape
        prev_shape = tuple((prev_shape[a] + 2 * pad[a] - kdim[a]) // stride + 1
                           for a in range(3))
        in_ch = out_ch

    body_entries = in_ch * prev_shape[0] * prev_shape[1] * prev_shape[2]
    flat_pos = C * D * H * W
    intermediate = int(math.sqrt(body_entries * flat_pos))

    def linear(key, n_in, n_out):
        k1, k2 = jax.random.split(key)
        w = 0.1 * jax.random.normal(k1, (n_out, n_in), jnp.float32)  # (out, in)
        b = 0.1 * jax.random.normal(k2, (n_out,), jnp.float32)
        return w, b

    key, k1, k2, k3 = jax.random.split(key, 4)
    fc_w, fc_b = linear(k1, body_entries, num_latent)
    d1_w, d1_b = linear(k2, num_latent, intermediate)
    d2_w, d2_b = linear(k3, intermediate, flat_pos)

    return dict(convs=conv_layers, fc_w=fc_w, fc_b=fc_b, d1_w=d1_w, d1_b=d1_b,
                d2_w=d2_w, d2_b=d2_b, body_entries=body_entries,
                position_shape=position_shape)


def fold_dense_params(raw, mm_dtype=jnp.bfloat16, lane_pad=LANE):
    """Fold convs to dense matrices, pre-orient linears (in, out), zero-pad
    interior hidden widths to lane multiples (mathematically exact), and emit
    matmul operands in `mm_dtype` (biases stay f32)."""
    layers = []
    for layer in raw["convs"]:
        mat, out_sp = conv3d_to_dense(np.asarray(layer["w"]), layer["in_shape"],
                                      layer["stride"], layer["pad"])
        b_dense = np.repeat(np.asarray(layer["b"]),
                            out_sp[0] * out_sp[1] * out_sp[2]).astype(np.float32)
        layers.append([mat, b_dense])
    for w, b in ((raw["fc_w"], raw["fc_b"]), (raw["d1_w"], raw["d1_b"]),
                 (raw["d2_w"], raw["d2_b"])):
        layers.append([np.asarray(w).T.copy(), np.asarray(b, np.float32)])

    # Exact zero-padding of interior hidden widths (e.g. 32 -> 128, 286 -> 384):
    # zero weight cols + zero bias on layer i, zero weight rows on layer i+1;
    # ReLU(0) = 0 keeps the math bit-identical.  First K / final N untouched.
    for i in range(len(layers) - 1):
        w, b = layers[i]
        n = w.shape[1]
        n_pad = -(-n // lane_pad) * lane_pad
        if n_pad != n:
            layers[i][0] = np.pad(w, ((0, 0), (0, n_pad - n)))
            layers[i][1] = np.pad(b, (0, n_pad - n))
            layers[i + 1][0] = np.pad(layers[i + 1][0],
                                      ((0, n_pad - n), (0, 0)))

    dense = []
    for w, b in layers:
        dense += [jnp.asarray(w, mm_dtype), jnp.asarray(b, jnp.float32)]
    return tuple(dense)


# ----------------------------------------------------------------------------
# Pure-JAX reference (mirrors the PyTorch forward) for correctness checking.
# ----------------------------------------------------------------------------
def reference_forward(raw, position_shape, x):
    hp = jax.lax.Precision.HIGHEST
    act = x
    for layer in raw["convs"]:
        act = jax.lax.conv_general_dilated(
            act, layer["w"],
            window_strides=(layer["stride"],) * 3,
            padding=[(p, p) for p in layer["pad"]],
            dimension_numbers=("NCDHW", "OIDHW", "NCDHW"),
            precision=hp)
        act = jnp.maximum(act + layer["b"].reshape(1, -1, 1, 1, 1), 0.0)
    B = x.shape[0]
    act = act.reshape(B, -1)
    act = jnp.maximum(jnp.dot(act, raw["fc_w"].T, precision=hp) + raw["fc_b"], 0.0)
    act = jnp.maximum(jnp.dot(act, raw["d1_w"].T, precision=hp) + raw["d1_b"], 0.0)
    act = jnp.dot(act, raw["d2_w"].T, precision=hp) + raw["d2_b"]
    C, D, H, W = position_shape
    return act.reshape(B, C, D, H, W)


if __name__ == "__main__":
    # Config consistent with Net(positionTensorShape=(2,5,8,8),
    # bodyStructure=[(3,8,2),(3,16,2)], numberOfLatentVariables=32, zeroPadding=True)
    position_shape = (2, 5, 8, 8)            # (C, D, H, W)
    body_structure = [(3, 8, 2), (3, 16, 2)]
    num_latent = 32
    batch = 2

    key = jax.random.PRNGKey(0)
    key, pkey, xkey = jax.random.split(key, 3)
    raw = build_net_params(pkey, position_shape, body_structure, num_latent,
                           zero_padding=True)
    x = jax.random.normal(xkey, (batch,) + position_shape, jnp.float32)

    forward = make_forward_fn(position_shape)
    ref = jax.block_until_ready(reference_forward(raw, position_shape, x))
    expected_shape = (batch,) + position_shape

    # f32 weight path: tight parity with the f32 PyTorch module.
    dense_f32 = fold_dense_params(raw, mm_dtype=jnp.float32)
    out_f32 = jax.block_until_ready(forward(dense_f32, x))
    assert out_f32.shape == expected_shape, (out_f32.shape, expected_shape)
    assert out_f32.dtype == jnp.float32
    assert bool(jnp.all(jnp.isfinite(out_f32)))
    err_f32 = float(jnp.max(jnp.abs(out_f32 - ref)))
    assert err_f32 < 5e-2, f"f32 path mismatch: max abs err = {err_f32}"

    # bf16 weight path (recommended fast path): f32 accumulation, quantization
    # noise only -> slightly looser tolerance.
    dense_bf16 = fold_dense_params(raw, mm_dtype=jnp.bfloat16)
    out_bf16 = jax.block_until_ready(forward(dense_bf16, x))
    assert out_bf16.shape == expected_shape, (out_bf16.shape, expected_shape)
    assert out_bf16.dtype == jnp.float32
    assert bool(jnp.all(jnp.isfinite(out_bf16)))
    err_bf16 = float(jnp.max(jnp.abs(out_bf16 - ref)))
    assert err_bf16 < 1e-1, f"bf16 path mismatch: max abs err = {err_bf16}"

    print("KERNEL_OK")
</pallas_src>

<mosaic_0001>
module attributes {stable_mosaic.version = 11 : i64} {
  func.func @k(%arg0: i32, %arg1: memref<8x128xf32, #tpu.memory_space<vmem>>, %arg2: memref<8x128xf32, #tpu.memory_space<vmem>>) attributes {dimension_semantics = [#tpu.dimension_semantics<arbitrary>], iteration_bounds = array<i64: 1>, scalar_prefetch = 0 : i64, scratch_operands = 0 : i64, tpu.core_type = #tpu.core_type<tc>, window_params = [{pipeline_mode = #tpu.pipeline_mode<synchronous>, transform_indices = @transform_0, window_bounds = array<i64: 8, 128>}, {pipeline_mode = #tpu.pipeline_mode<synchronous>, transform_indices = @transform_1, window_bounds = array<i64: 8, 128>}]} {
    %c0 = arith.constant 0 : index
    %c0_0 = arith.constant 0 : index
    %0 = vector.load %arg1[%c0, %c0_0] : memref<8x128xf32, #tpu.memory_space<vmem>>, vector<8x128xf32>
    %cst = arith.constant 1.000000e+00 : f32
    %1 = vector.broadcast %cst : f32 to vector<8x128xf32>
    %2 = arith.addf %0, %1 : vector<8x128xf32>
    %c0_1 = arith.constant 0 : index
    %c0_2 = arith.constant 0 : index
    %3 = vector.load %arg2[%c0_1, %c0_2] : memref<8x128xf32, #tpu.memory_space<vmem>>, vector<8x128xf32>
    tpu.vector_store %arg2[%c0_1, %c0_2], %2 {strides = array<i32>} : memref<8x128xf32, #tpu.memory_space<vmem>>, vector<8x128xf32>,
    return
  }
  func.func @transform_0(%arg0: i32) -> (i32, i32) {
    %c0_i32 = arith.constant 0 : i32
    %c0_i32_0 = arith.constant 0 : i32
    %c0_i32_1 = arith.constant 0 : i32
    return %c0_i32, %c0_i32_0 : i32, i32
  }
  func.func @transform_1(%arg0: i32) -> (i32, i32) {
    %c0_i32 = arith.constant 0 : i32
    %c0_i32_0 = arith.constant 0 : i32
    %c0_i32_1 = arith.constant 0 : i32
    return %c0_i32, %c0_i32_0 : i32, i32
  }
}

module attributes {stable_mosaic.version = 11 : i64} {
  func.func @_fused_forward_kernel(%arg0: i32, %arg1: memref<2x640xf32, #tpu.memory_space<vmem>>, %arg2: memref<640x384xf32, #tpu.memory_space<vmem>>, %arg3: memref<1x384xf32, #tpu.memory_space<vmem>>, %arg4: memref<384x128xf32, #tpu.memory_space<vmem>>, %arg5: memref<1x128xf32, #tpu.memory_space<vmem>>, %arg6: memref<128x128xf32, #tpu.memory_space<vmem>>, %arg7: memref<1x128xf32, #tpu.memory_space<vmem>>, %arg8: memref<128x384xf32, #tpu.memory_space<vmem>>, %arg9: memref<1x384xf32, #tpu.memory_space<vmem>>, %arg10: memref<384x640xf32, #tpu.memory_space<vmem>>, %arg11: memref<1x640xf32, #tpu.memory_space<vmem>>, %arg12: memref<2x640xf32, #tpu.memory_space<vmem>>) attributes {dimension_semantics = [#tpu.dimension_semantics<parallel>], iteration_bounds = array<i64: 1>, scalar_prefetch = 0 : i64, scratch_operands = 0 : i64, tpu.core_type = #tpu.core_type<tc>, window_params = [{transform_indices = @transform_0, window_bounds = array<i64: 2, 640>}, {pipeline_mode = #tpu.pipeline_mode<synchronous>, transform_indices = @transform_1, window_bounds = array<i64: 640, 384>}, {pipeline_mode = #tpu.pipeline_mode<synchronous>, transform_indices = @transform_2, window_bounds = array<i64: 1, 384>}, {pipeline_mode = #tpu.pipeline_mode<synchronous>, transform_indices = @transform_3, window_bounds = array<i64: 384, 128>}, {pipeline_mode = #tpu.pipeline_mode<synchronous>, transform_indices = @transform_4, window_bounds = array<i64: 1, 128>}, {pipeline_mode = #tpu.pipeline_mode<synchronous>, transform_indices = @transform_5, window_bounds = array<i64: 128, 128>}, {pipeline_mode = #tpu.pipeline_mode<synchronous>, transform_indices = @transform_6, window_bounds = array<i64: 1, 128>}, {pipeline_mode = #tpu.pipeline_mode<synchronous>, transform_indices = @transform_7, window_bounds = array<i64: 128, 384>}, {pipeline_mode = #tpu.pipeline_mode<synchronous>, transform_indices = @transform_8, window_bounds = array<i64: 1, 384>}, {pipeline_mode = #tpu.pipeline_mode<synchronous>, transform_indices = @transform_9, window_bounds = array<i64: 384, 640>}, {pipeline_mode = #tpu.pipeline_mode<synchronous>, transform_indices = @transform_10, window_bounds = array<i64: 1, 640>}, {transform_indices = @transform_11, window_bounds = array<i64: 2, 640>}]} {
    %c0 = arith.constant 0 : index
    %c0_0 = arith.constant 0 : index
    %0 = vector.load %arg1[%c0, %c0_0] : memref<2x640xf32, #tpu.memory_space<vmem>>, vector<2x640xf32>
    %c0_1 = arith.constant 0 : index
    %c0_2 = arith.constant 0 : index
    %1 = vector.load %arg2[%c0_1, %c0_2] : memref<640x384xf32, #tpu.memory_space<vmem>>, vector<640x384xf32>
    %cst = arith.constant dense<0.000000e+00> : vector<2x384xf32>
    %2 = tpu.matmul %0, %1, %cst {dimension_numbers = #tpu.dot_dimension_numbers<[1], [0], [0], [1], [0, 0, 1, 1], [], []>} : vector<2x640xf32>, vector<640x384xf32>, vector<2x384xf32> -> vector<2x384xf32>
    %c0_3 = arith.constant 0 : index
    %c0_4 = arith.constant 0 : index
    %3 = vector.load %arg3[%c0_3, %c0_4] : memref<1x384xf32, #tpu.memory_space<vmem>>, vector<1x384xf32>
    %4 = vector.broadcast %3 : vector<1x384xf32> to vector<2x384xf32>
    %5 = arith.addf %2, %4 : vector<2x384xf32>
    %cst_5 = arith.constant 0.000000e+00 : f32
    %6 = vector.broadcast %cst_5 : f32 to vector<2x384xf32>
    %7 = arith.maximumf %5, %6 : vector<2x384xf32>
    %c0_6 = arith.constant 0 : index
    %c0_7 = arith.constant 0 : index
    %8 = vector.load %arg4[%c0_6, %c0_7] : memref<384x128xf32, #tpu.memory_space<vmem>>, vector<384x128xf32>
    %cst_8 = arith.constant dense<0.000000e+00> : vector<2x128xf32>
    %9 = tpu.matmul %7, %8, %cst_8 {dimension_numbers = #tpu.dot_dimension_numbers<[1], [0], [0], [1], [0, 0, 1, 1], [], []>} : vector<2x384xf32>, vector<384x128xf32>, vector<2x128xf32> -> vector<2x128xf32>
    %c0_9 = arith.constant 0 : index
    %c0_10 = arith.constant 0 : index
    %10 = vector.load %arg5[%c0_9, %c0_10] : memref<1x128xf32, #tpu.memory_space<vmem>>, vector<1x128xf32>
    %11 = vector.broadcast %10 : vector<1x128xf32> to vector<2x128xf32>
    %12 = arith.addf %9, %11 : vector<2x128xf32>
    %cst_11 = arith.constant 0.000000e+00 : f32
    %13 = vector.broadcast %cst_11 : f32 to vector<2x128xf32>
    %14 = arith.maximumf %12, %13 : vector<2x128xf32>
    %c0_12 = arith.constant 0 : index
    %c0_13 = arith.constant 0 : index
    %15 = vector.load %arg6[%c0_12, %c0_13] : memref<128x128xf32, #tpu.memory_space<vmem>>, vector<128x128xf32>
    %cst_14 = arith.constant dense<0.000000e+00> : vector<2x128xf32>
    %16 = tpu.matmul %14, %15, %cst_14 {dimension_numbers = #tpu.dot_dimension_numbers<[1], [0], [0], [1], [0, 0, 1, 1], [], []>} : vector<2x128xf32>, vector<128x128xf32>, vector<2x128xf32> -> vector<2x128xf32>
    %c0_15 = arith.constant 0 : index
    %c0_16 = arith.constant 0 : index
    %17 = vector.load %arg7[%c0_15, %c0_16] : memref<1x128xf32, #tpu.memory_space<vmem>>, vector<1x128xf32>
    %18 = vector.broadcast %17 : vector<1x128xf32> to vector<2x128xf32>
    %19 = arith.addf %16, %18 : vector<2x128xf32>
    %cst_17 = arith.constant 0.000000e+00 : f32
    %20 = vector.broadcast %cst_17 : f32 to vector<2x128xf32>
    %21 = arith.maximumf %19, %20 : vector<2x128xf32>
    %c0_18 = arith.constant 0 : index
    %c0_19 = arith.constant 0 : index
    %22 = vector.load %arg8[%c0_18, %c0_19] : memref<128x384xf32, #tpu.memory_space<vmem>>, vector<128x384xf32>
    %cst_20 = arith.constant dense<0.000000e+00> : vector<2x384xf32>
    %23 = tpu.matmul %21, %22, %cst_20 {dimension_numbers = #tpu.dot_dimension_numbers<[1], [0], [0], [1], [0, 0, 1, 1], [], []>} : vector<2x128xf32>, vector<128x384xf32>, vector<2x384xf32> -> vector<2x384xf32>
    %c0_21 = arith.constant 0 : index
    %c0_22 = arith.constant 0 : index
    %24 = vector.load %arg9[%c0_21, %c0_22] : memref<1x384xf32, #tpu.memory_space<vmem>>, vector<1x384xf32>
    %25 = vector.broadcast %24 : vector<1x384xf32> to vector<2x384xf32>
    %26 = arith.addf %23, %25 : vector<2x384xf32>
    %cst_23 = arith.constant 0.000000e+00 : f32
    %27 = vector.broadcast %cst_23 : f32 to vector<2x384xf32>
    %28 = arith.maximumf %26, %27 : vector<2x384xf32>
    %c0_24 = arith.constant 0 : index
    %c0_25 = arith.constant 0 : index
    %29 = vector.load %arg10[%c0_24, %c0_25] : memref<384x640xf32, #tpu.memory_space<vmem>>, vector<384x640xf32>
    %cst_26 = arith.constant dense<0.000000e+00> : vector<2x640xf32>
    %30 = tpu.matmul %28, %29, %cst_26 {dimension_numbers = #tpu.dot_dimension_numbers<[1], [0], [0], [1], [0, 0, 1, 1], [], []>} : vector<2x384xf32>, vector<384x640xf32>, vector<2x640xf32> -> vector<2x640xf32>
    %c0_27 = arith.constant 0 : index
    %c0_28 = arith.constant 0 : index
    %31 = vector.load %arg11[%c0_27, %c0_28] : memref<1x640xf32, #tpu.memory_space<vmem>>, vector<1x640xf32>
    %32 = vector.broadcast %31 : vector<1x640xf32> to vector<2x640xf32>
    %33 = arith.addf %30, %32 : vector<2x640xf32>
    %c0_29 = arith.constant 0 : index
    %c0_30 = arith.constant 0 : index
    %34 = vector.load %arg12[%c0_29, %c0_30] : memref<2x640xf32, #tpu.memory_space<vmem>>, vector<2x640xf32>
    tpu.vector_store %arg12[%c0_29, %c0_30], %33 {strides = array<i32>} : memref<2x640xf32, #tpu.memory_space<vmem>>, vector<2x640xf32>,
    return
  }
  func.func @transform_0(%arg0: i32) -> (i32, i32) {
    %c0_i32 = arith.constant 0 : i32
    %c0_i32_0 = arith.constant 0 : i32
    return %arg0, %c0_i32 : i32, i32
  }
  func.func @transform_1(%arg0: i32) -> (i32, i32) {
    %c0_i32 = arith.constant 0 : i32
    %c0_i32_0 = arith.constant 0 : i32
    %c0_i32_1 = arith.constant 0 : i32
    return %c0_i32, %c0_i32_0 : i32, i32
  }
  func.func @transform_2(%arg0: i32) -> (i32, i32) {
    %c0_i32 = arith.constant 0 : i32
    %c0_i32_0 = arith.constant 0 : i32
    %c0_i32_1 = arith.constant 0 : i32
    return %c0_i32, %c0_i32_0 : i32, i32
  }
  func.func @transform_3(%arg0: i32) -> (i32, i32) {
    %c0_i32 = arith.constant 0 : i32
    %c0_i32_0 = arith.constant 0 : i32
    %c0_i32_1 = arith.constant 0 : i32
    return %c0_i32, %c0_i32_0 : i32, i32
  }
  func.func @transform_4(%arg0: i32) -> (i32, i32) {
    %c0_i32 = arith.constant 0 : i32
    %c0_i32_0 = arith.constant 0 : i32
    %c0_i32_1 = arith.constant 0 : i32
    return %c0_i32, %c0_i32_0 : i32, i32
  }
  func.func @transform_5(%arg0: i32) -> (i32, i32) {
    %c0_i32 = arith.constant 0 : i32
    %c0_i32_0 = arith.constant 0 : i32
    %c0_i32_1 = arith.constant 0 : i32
    return %c0_i32, %c0_i32_0 : i32, i32
  }
  func.func @transform_6(%arg0: i32) -> (i32, i32) {
    %c0_i32 = arith.constant 0 : i32
    %c0_i32_0 = arith.constant 0 : i32
    %c0_i32_1 = arith.constant 0 : i32
    return %c0_i32, %c0_i32_0 : i32, i32
  }
  func.func @transform_7(%arg0: i32) -> (i32, i32) {
    %c0_i32 = arith.constant 0 : i32
    %c0_i32_0 = arith.constant 0 : i32
    %c0_i32_1 = arith.constant 0 : i32
    return %c0_i32, %c0_i32_0 : i32, i32
  }
  func.func @transform_8(%arg0: i32) -> (i32, i32) {
    %c0_i32 = arith.constant 0 : i32
    %c0_i32_0 = arith.constant 0 : i32
    %c0_i32_1 = arith.constant 0 : i32
    return %c0_i32, %c0_i32_0 : i32, i32
  }
  func.func @transform_9(%arg0: i32) -> (i32, i32) {
    %c0_i32 = arith.constant 0 : i32
    %c0_i32_0 = arith.constant 0 : i32
    %c0_i32_1 = arith.constant 0 : i32
    return %c0_i32, %c0_i32_0 : i32, i32
  }
  func.func @transform_10(%arg0: i32) -> (i32, i32) {
    %c0_i32 = arith.constant 0 : i32
    %c0_i32_0 = arith.constant 0 : i32
    %c0_i32_1 = arith.constant 0 : i32
    return %c0_i32, %c0_i32_0 : i32, i32
  }
  func.func @transform_11(%arg0: i32) -> (i32, i32) {
    %c0_i32 = arith.constant 0 : i32
    %c0_i32_0 = arith.constant 0 : i32
    return %arg0, %c0_i32 : i32, i32
  }
}

</mosaic_0001>

<llo_original>
// kernel: tpu_custom_call.1
$region0: #{tpu_custom_call.1}
  #allocation0 [shape = 'u32[]', space=smem, size = 0x4, offset = 0x4, fixed_abs, tag = 'smem constant byte address 0x4 - core index']
  #allocation1 [shape = 'u32[144,128]{1,0:T(1,128)}', space=vmem, size = 0x12000, scoped, tag = 'internal scratch']
  %s0 = inlined_call_operand.hbm [shape: f32[8,128], index: 0, kind: input, shape index: {}]
  %s1 = inlined_call_operand.hbm [shape: f32[8,128], index: 1, kind: output, shape index: {}]
  %s2 = sld [smem:[#allocation0]]
  $region18: #{tpu_custom_call.1} parent=0
    _
  %s4 = ssub.s32 1, %s2
  %s5 = scalar_select 0, %s4, %s2
  $region1: #{tpu_custom_call.1} parent=0
    #allocation2 [shape = 'u8[4096]{0}', space=vmem, size = 0x1000, scoped, tag = 'input window, operand 0, single buffered']
    #allocation3 [shape = 's32[1]{0}', space=sflag, size = 0x4, scoped, tag = 'scoped memory for tpu_custom_call.1']
    #allocation4 [shape = 's32[1]{0}', space=sflag, size = 0x4, scoped, tag = 'scoped memory for tpu_custom_call.1']
    #allocation5 [shape = 'u8[4096]{0}', space=vmem, size = 0x1000, scoped, tag = 'output window, operand 0, single buffered']
    %6 = vsyncpa [#allocation3], 0
    %7 = vsyncpa [#allocation4], 0
    // Predicated region
    $region2: #{tpu_custom_call.1} parent=1 // pred_check
      _
    $region3: #{tpu_custom_call.1} parent=1 // pred_check_branch
      %9 = sbr.rel (0) target = $region5
    $region4: #{tpu_custom_call.1} parent=1 // pred_region
      %s11 = ssub.s32 128, 128
      %12 = vsyncadd [#allocation3], %s11
      %s14 = sshll.u32 [#allocation2], 4
      %s15 = int_to_ptr.vmem [resolvable:$true] %s14
      %17 = dma.hbm_to_vmem [thread:$0]  %s0, 128, %s15, [#allocation3]
    $region5: #{tpu_custom_call.1} parent=1 // pred_fallthru
      _
    // Predicated region
    $region6: #{tpu_custom_call.1} parent=1 // pred_check
      _
    $region7: #{tpu_custom_call.1} parent=1 // pred_check_branch
      %19 = sbr.rel (0) target = $region9
    $region8: #{tpu_custom_call.1} parent=1 // pred_region
      %20 = dma.done [#allocation3], 128
    $region9: #{tpu_custom_call.1} parent=1 // pred_fallthru
      _
    %v21 = vld [vmem:[#allocation2] sm:$0xff]
    %v22 = vadd.f32 %v21, 1.0
    %23 = vst [vmem:[#allocation5] sm:$0xff] %v22
    // Predicated region
    $region10: #{tpu_custom_call.1} parent=1 // pred_check
      _
    $region11: #{tpu_custom_call.1} parent=1 // pred_check_branch
      %25 = sbr.rel (0) target = $region13
    $region12: #{tpu_custom_call.1} parent=1 // pred_region
      %s27 = ssub.s32 128, 128
      %28 = vsyncadd [#allocation4], %s27
      %s30 = sshll.u32 [#allocation5], 4
      %s31 = int_to_ptr.vmem [resolvable:$true] %s30
      %33 = dma.vmem_to_hbm [thread:$0]  %s31, 128, %s1, [#allocation4]
    $region13: #{tpu_custom_call.1} parent=1 // pred_fallthru
      _
    // Predicated region
    $region14: #{tpu_custom_call.1} parent=1 // pred_check
      _
    $region15: #{tpu_custom_call.1} parent=1 // pred_check_branch
      %35 = sbr.rel (0) target = $region17
    $region16: #{tpu_custom_call.1} parent=1 // pred_region
      %36 = dma.done [#allocation4], 128
    $region17: #{tpu_custom_call.1} parent=1 // pred_fallthru
      _
    %37 = vsyncpa [#allocation3], 1
    %38 = vsyncpa [#allocation4], 1

// kernel: forward.1
$region0: #{forward.1}
  #allocation0 [shape = 'u32[]', space=smem, size = 0x4, offset = 0x4, fixed_abs, tag = 'smem constant byte address 0x4 - core index']
  #allocation1 [shape = 'u32[144,128]{1,0:T(1,128)}', space=vmem, size = 0x12000, scoped, tag = 'internal scratch']
  %s0 = inlined_call_operand.vmem [shape: f32[2,640], index: 0, kind: input, shape index: {}]
  %s1 = inlined_call_operand.hbm [shape: f32[640,384], index: 1, kind: input, shape index: {}]
  %s2 = inlined_call_operand.vmem [shape: f32[1,384], index: 2, kind: input, shape index: {}]
  %s3 = inlined_call_operand.hbm [shape: f32[384,128], index: 3, kind: input, shape index: {}]
  %s4 = inlined_call_operand.vmem [shape: f32[1,128], index: 4, kind: input, shape index: {}]
  %s5 = inlined_call_operand.vmem [shape: f32[128,128], index: 5, kind: input, shape index: {}]
  %s6 = inlined_call_operand.vmem [shape: f32[1,128], index: 6, kind: input, shape index: {}]
  %s7 = inlined_call_operand.hbm [shape: f32[128,384], index: 7, kind: input, shape index: {}]
  %s8 = inlined_call_operand.vmem [shape: f32[1,384], index: 8, kind: input, shape index: {}]
  %s9 = inlined_call_operand.hbm [shape: f32[384,640], index: 9, kind: input, shape index: {}]
  %s10 = inlined_call_operand.vmem [shape: f32[1,640], index: 10, kind: input, shape index: {}]
  %s11 = inlined_call_operand.vmem [shape: f32[2,640], index: 11, kind: output, shape index: {}]
  %s12 = sld [smem:[#allocation0]]
  $region70: #{forward.1} parent=0
    _
  %s14 = ssub.s32 1, %s12
  %s15 = scalar_select 0, %s14, %s12
  $region1: #{forward.1} parent=0
    #allocation2 [shape = 'u8[983040]{0}', space=vmem, size = 0xf0000, scoped, tag = 'input window, operand 1, single buffered']
    #allocation3 [shape = 's32[1]{0}', space=sflag, size = 0x4, scoped, tag = 'scoped memory for forward.1']
    #allocation4 [shape = 'u8[196608]{0}', space=vmem, size = 0x30000, scoped, tag = 'input window, operand 3, single buffered']
    #allocation5 [shape = 's32[1]{0}', space=sflag, size = 0x4, scoped, tag = 'scoped memory for forward.1']
    #allocation6 [shape = 'u8[196608]{0}', space=vmem, size = 0x30000, scoped, tag = 'input window, operand 7, single buffered']
    #allocation7 [shape = 'u8[983040]{0}', space=vmem, size = 0xf0000, scoped, tag = 'input window, operand 9, single buffered']
    #allocation8 [shape = 's32[1]{0}', space=sflag, size = 0x4, scoped, tag = 'scoped memory for forward.1']
    %16 = vsyncpa [#allocation3], 0
    %17 = vsyncpa [#allocation5], 0
    %18 = vsyncpa [#allocation8], 0
    // Predicated region
    $region2: #{forward.1} parent=1 // pred_check
      _
    $region3: #{forward.1} parent=1 // pred_check_branch
      %20 = sbr.rel (0) target = $region5
    $region4: #{forward.1} parent=1 // pred_region
      _
    $region5: #{forward.1} parent=1 // pred_fallthru
      _
    // Predicated region
    $region6: #{forward.1} parent=1 // pred_check
      _
    $region7: #{forward.1} parent=1 // pred_check_branch
      %22 = sbr.rel (0) target = $region9
    $region8: #{forward.1} parent=1 // pred_region
      %s24 = ssub.s32 30720, 30720
      %25 = vsyncadd [#allocation3], %s24
      %s26 = sshll.u32 [#allocation2], 4
      %s27 = int_to_ptr.vmem [resolvable:$true] %s26
      %32 = dma.hbm_to_vmem [thread:$0]  %s1, 30720, %s27, [#allocation3], 384, 384, 24
    $region9: #{forward.1} parent=1 // pred_fallthru
      _
    // Predicated region
    $region10: #{forward.1} parent=1 // pred_check
      _
    $region11: #{forward.1} parent=1 // pred_check_branch
      %34 = sbr.rel (0) target = $region13
    $region12: #{forward.1} parent=1 // pred_region
      _
    $region13: #{forward.1} parent=1 // pred_fallthru
      _
    // Predicated region
    $region14: #{forward.1} parent=1 // pred_check
      _
    $region15: #{forward.1} parent=1 // pred_check_branch
      %36 = sbr.rel (0) target = $region17
    $region16: #{forward.1} parent=1 // pred_region
      %s38 = ssub.s32 6144, 6144
      %39 = vsyncadd [#allocation5], %s38
      %s40 = sshll.u32 [#allocation4], 4
      %s41 = int_to_ptr.vmem [resolvable:$true] %s40
      %46 = dma.hbm_to_vmem [thread:$0]  %s3, 6144, %s41, [#allocation5], 128, 128, 8
    $region17: #{forward.1} parent=1 // pred_fallthru
      _
    // Predicated region
    $region18: #{forward.1} parent=1 // pred_check
      _
    $region19: #{forward.1} parent=1 // pred_check_branch
      %48 = sbr.rel (0) target = $region21
    $region20: #{forward.1} parent=1 // pred_region
      _
    $region21: #{forward.1} parent=1 // pred_fallthru
      _
    // Predicated region
    $region22: #{forward.1} parent=1 // pred_check
      _
    $region23: #{forward.1} parent=1 // pred_check_branch
      %50 = sbr.rel (0) target = $region25
    $region24: #{forward.1} parent=1 // pred_region
      _
    $region25: #{forward.1} parent=1 // pred_fallthru
      _
    // Predicated region
    $region26: #{forward.1} parent=1 // pred_check
      _
    $region27: #{forward.1} parent=1 // pred_check_branch
      %52 = sbr.rel (0) target = $region29
    $region28: #{forward.1} parent=1 // pred_region
      _
    $region29: #{forward.1} parent=1 // pred_fallthru
      _
    // Predicated region
    $region30: #{forward.1} parent=1 // pred_check
      _
    $region31: #{forward.1} parent=1 // pred_check_branch
      %54 = sbr.rel (0) target = $region33
    $region32: #{forward.1} parent=1 // pred_region
      %s56 = ssub.s32 6144, 6144
      %57 = vsyncadd [#allocation5], %s56
      %s58 = sshll.u32 [#allocation6], 4
      %s59 = int_to_ptr.vmem [resolvable:$true] %s58
      %64 = dma.hbm_to_vmem [thread:$0]  %s7, 6144, %s59, [#allocation5], 384, 384, 24
    $region33: #{forward.1} parent=1 // pred_fallthru
      _
    // Predicated region
    $region34: #{forward.1} parent=1 // pred_check
      _
    $region35: #{forward.1} parent=1 // pred_check_branch
      %66 = sbr.rel (0) target = $region37
    $region36: #{forward.1} parent=1 // pred_region
      _
    $region37: #{forward.1} parent=1 // pred_fallthru
      _
    // Predicated region
    $region38: #{forward.1} parent=1 // pred_check
      _
    $region39: #{forward.1} parent=1 // pred_check_branch
      %68 = sbr.rel (0) target = $region41
    $region40: #{forward.1} parent=1 // pred_region
      %s70 = ssub.s32 30720, 30720
      %71 = vsyncadd [#allocation8], %s70
      %s72 = sshll.u32 [#allocation7], 4
      %s73 = int_to_ptr.vmem [resolvable:$true] %s72
      %78 = dma.hbm_to_vmem [thread:$0]  %s9, 30720, %s73, [#allocation8], 640, 640, 40
    $region41: #{forward.1} parent=1 // pred_fallthru
      _
    // Predicated region
    $region42: #{forward.1} parent=1 // pred_check
      _
    $region43: #{forward.1} parent=1 // pred_check_branch
      %80 = sbr.rel (0) target = $region45
    $region44: #{forward.1} parent=1 // pred_region
      _
    $region45: #{forward.1} parent=1 // pred_fallthru
      _
    // Predicated region
    $region46: #{forward.1} parent=1 // pred_check
      _
    $region47: #{forward.1} parent=1 // pred_check_branch
      %82 = sbr.rel (0) target = $region49
    $region48: #{forward.1} parent=1 // pred_region
      %83 = dma.done [#allocation3], 30720
    $region49: #{forward.1} parent=1 // pred_fallthru
      _
    // Predicated region
    $region50: #{forward.1} parent=1 // pred_check
      _
    $region51: #{forward.1} parent=1 // pred_check_branch
      %85 = sbr.rel (0) target = $region53
    $region52: #{forward.1} parent=1 // pred_region
      %86 = dma.done [#allocation5], 6144
    $region53: #{forward.1} parent=1 // pred_fallthru
      _
    // Predicated region
    $region54: #{forward.1} parent=1 // pred_check
      _
    $region55: #{forward.1} parent=1 // pred_check_branch
      %88 = sbr.rel (0) target = $region57
    $region56: #{forward.1} parent=1 // pred_region
      %89 = dma.done [#allocation5], 6144
    $region57: #{forward.1} parent=1 // pred_fallthru
      _
    // Predicated region
    $region58: #{forward.1} parent=1 // pred_check
      _
    $region59: #{forward.1} parent=1 // pred_check_branch
      %91 = sbr.rel (0) target = $region61
    $region60: #{forward.1} parent=1 // pred_region
      %92 = dma.done [#allocation8], 30720
    $region61: #{forward.1} parent=1 // pred_fallthru
      _
    %v93 = vld [vmem:[%s0] sm:$0xff]
    %v94 = vld [vmem:[%s0 + $0x8] sm:$0x3]
    %v95 = vld [vmem:[#allocation2] sm:$0xff]
    %v96 = vld [vmem:[#allocation2 + $0x8] sm:$0xff]
    %v97 = vld [vmem:[#allocation2 + $0x10] sm:$0xff]
    %v98 = vld [vmem:[#allocation2 + $0x18] sm:$0xff]
    %v99 = vld [vmem:[#allocation2 + $0x20] sm:$0xff]
    %v100 = vld [vmem:[#allocation2 + $0x28] sm:$0xff]
    %v101 = vld [vmem:[#allocation2 + $0x30] sm:$0xff]
    %v102 = vld [vmem:[#allocation2 + $0x38] sm:$0xff]
    %v103 = vld [vmem:[#allocation2 + $0x40] sm:$0xff]
    %v104 = vld [vmem:[#allocation2 + $0x48] sm:$0xff]
    %v105 = vld [vmem:[#allocation2 + $0x50] sm:$0xff]
    %v106 = vld [vmem:[#allocation2 + $0x58] sm:$0xff]
    %v107 = vld [vmem:[#allocation2 + $0x60] sm:$0xff]
    %v108 = vld [vmem:[#allocation2 + $0x68] sm:$0xff]
    %v109 = vld [vmem:[#allocation2 + $0x70] sm:$0xff]
    %v110 = vld [vmem:[#allocation2 + $0x78] sm:$0xff]
    %v111 = vld [vmem:[#allocation2 + $0x80] sm:$0xff]
    %v112 = vld [vmem:[#allocation2 + $0x88] sm:$0xff]
    %v113 = vld [vmem:[#allocation2 + $0x90] sm:$0xff]
    %v114 = vld [vmem:[#allocation2 + $0x98] sm:$0xff]
    %v115 = vld [vmem:[#allocation2 + $0xa0] sm:$0xff]
    %v116 = vld [vmem:[#allocation2 + $0xa8] sm:$0xff]
    %v117 = vld [vmem:[#allocation2 + $0xb0] sm:$0xff]
    %v118 = vld [vmem:[#allocation2 + $0xb8] sm:$0xff]
    %v119 = vld [vmem:[#allocation2 + $0xc0] sm:$0xff]
    %v120 = vld [vmem:[#allocation2 + $0xc8] sm:$0xff]
    %v121 = vld [vmem:[#allocation2 + $0xd0] sm:$0xff]
    %v122 = vld [vmem:[#allocation2 + $0xd8] sm:$0xff]
    %v123 = vld [vmem:[#allocation2 + $0xe0] sm:$0xff]
    %v124 = vld [vmem:[#allocation2 + $0xe8] sm:$0xff]
    %v125 = vld [vmem:[#allocation2 + $0xf0] sm:$0xff]
    %v126 = vld [vmem:[#allocation2 + $0xf8] sm:$0xff]
    %v127 = vld [vmem:[#allocation2 + $0x100] sm:$0xff]
    %v128 = vld [vmem:[#allocation2 + $0x108] sm:$0xff]
    %v129 = vld [vmem:[#allocation2 + $0x110] sm:$0xff]
    %v130 = vld [vmem:[#allocation2 + $0x118] sm:$0xff]
    %v131 = vld [vmem:[#allocation2 + $0x120] sm:$0xff]
    %v132 = vld [vmem:[#allocation2 + $0x128] sm:$0xff]
    %v133 = vld [vmem:[#allocation2 + $0x130] sm:$0xff]
    %v134 = vld [vmem:[#allocation2 + $0x138] sm:$0xff]
    %v135 = vld [vmem:[#allocation2 + $0x140] sm:$0xff]
    %v136 = vld [vmem:[#allocation2 + $0x148] sm:$0xff]
    %v137 = vld [vmem:[#allocation2 + $0x150] sm:$0xff]
    %v138 = vld [vmem:[#allocation2 + $0x158] sm:$0xff]
    %v139 = vld [vmem:[#allocation2 + $0x160] sm:$0xff]
    %v140 = vld [vmem:[#allocation2 + $0x168] sm:$0xff]
    %v141 = vld [vmem:[#allocation2 + $0x170] sm:$0xff]
    %v142 = vld [vmem:[#allocation2 + $0x178] sm:$0xff]
    %v143 = vld [vmem:[#allocation2 + $0x180] sm:$0xff]
    %v144 = vld [vmem:[#allocation2 + $0x188] sm:$0xff]
    %v145 = vld [vmem:[#allocation2 + $0x190] sm:$0xff]
    %v146 = vld [vmem:[#allocation2 + $0x198] sm:$0xff]
    %v147 = vld [vmem:[#allocation2 + $0x1a0] sm:$0xff]
    %v148 = vld [vmem:[#allocation2 + $0x1a8] sm:$0xff]
    %v149 = vld [vmem:[#allocation2 + $0x1b0] sm:$0xff]
    %v150 = vld [vmem:[#allocation2 + $0x1b8] sm:$0xff]
    %v151 = vld [vmem:[#allocation2 + $0x1c0] sm:$0xff]
    %v152 = vld [vmem:[#allocation2 + $0x1c8] sm:$0xff]
    %v153 = vld [vmem:[#allocation2 + $0x1d0] sm:$0xff]
    %v154 = vld [vmem:[#allocation2 + $0x1d8] sm:$0xff]
    %v155 = vld [vmem:[#allocation2 + $0x1e0] sm:$0xff]
    %v156 = vld [vmem:[#allocation2 + $0x1e8] sm:$0xff]
    %v157 = vld [vmem:[#allocation2 + $0x1f0] sm:$0xff]
    %v158 = vld [vmem:[#allocation2 + $0x1f8] sm:$0xff]
    %v159 = vld [vmem:[#allocation2 + $0x200] sm:$0xff]
    %v160 = vld [vmem:[#allocation2 + $0x208] sm:$0xff]
    %v161 = vld [vmem:[#allocation2 + $0x210] sm:$0xff]
    %v162 = vld [vmem:[#allocation2 + $0x218] sm:$0xff]
    %v163 = vld [vmem:[#allocation2 + $0x220] sm:$0xff]
    %v164 = vld [vmem:[#allocation2 + $0x228] sm:$0xff]
    %v165 = vld [vmem:[#allocation2 + $0x230] sm:$0xff]
    %v166 = vld [vmem:[#allocation2 + $0x238] sm:$0xff]
    %v167 = vld [vmem:[#allocation2 + $0x240] sm:$0xff]
    %v168 = vld [vmem:[#allocation2 + $0x248] sm:$0xff]
    %v169 = vld [vmem:[#allocation2 + $0x250] sm:$0xff]
    %v170 = vld [vmem:[#allocation2 + $0x258] sm:$0xff]
    %v171 = vld [vmem:[#allocation2 + $0x260] sm:$0xff]
    %v172 = vld [vmem:[#allocation2 + $0x268] sm:$0xff]
    %v173 = vld [vmem:[#allocation2 + $0x270] sm:$0xff]
    %v174 = vld [vmem:[#allocation2 + $0x278] sm:$0xff]
    %v175 = vld [vmem:[#allocation2 + $0x280] sm:$0xff]
    %v176 = vld [vmem:[#allocation2 + $0x288] sm:$0xff]
    %v177 = vld [vmem:[#allocation2 + $0x290] sm:$0xff]
    %v178 = vld [vmem:[#allocation2 + $0x298] sm:$0xff]
    %v179 = vld [vmem:[#allocation2 + $0x2a0] sm:$0xff]
    %v180 = vld [vmem:[#allocation2 + $0x2a8] sm:$0xff]
    %v181 = vld [vmem:[#allocation2 + $0x2b0] sm:$0xff]
    %v182 = vld [vmem:[#allocation2 + $0x2b8] sm:$0xff]
    %v183 = vld [vmem:[#allocation2 + $0x2c0] sm:$0xff]
    %v184 = vld [vmem:[#allocation2 + $0x2c8] sm:$0xff]
    %v185 = vld [vmem:[#allocation2 + $0x2d0] sm:$0xff]
    %v186 = vld [vmem:[#allocation2 + $0x2d8] sm:$0xff]
    %v187 = vld [vmem:[#allocation2 + $0x2e0] sm:$0xff]
    %v188 = vld [vmem:[#allocation2 + $0x2e8] sm:$0xff]
    %v189 = vld [vmem:[#allocation2 + $0x2f0] sm:$0xff]
    %v190 = vld [vmem:[#allocation2 + $0x2f8] sm:$0xff]
    %v191 = vld [vmem:[#allocation2 + $0x300] sm:$0xff]
    %v192 = vld [vmem:[#allocation2 + $0x308] sm:$0xff]
    %v193 = vld [vmem:[#allocation2 + $0x310] sm:$0xff]
    %v194 = vld [vmem:[#allocation2 + $0x318] sm:$0xff]
    %v195 = vld [vmem:[#allocation2 + $0x320] sm:$0xff]
    %v196 = vld [vmem:[#allocation2 + $0x328] sm:$0xff]
    %v197 = vld [vmem:[#allocation2 + $0x330] sm:$0xff]
    %v198 = vld [vmem:[#allocation2 + $0x338] sm:$0xff]
    %v199 = vld [vmem:[#allocation2 + $0x340] sm:$0xff]
    %v200 = vld [vmem:[#allocation2 + $0x348] sm:$0xff]
    %v201 = vld [vmem:[#allocation2 + $0x350] sm:$0xff]
    %v202 = vld [vmem:[#allocation2 + $0x358] sm:$0xff]
    %v203 = vld [vmem:[#allocation2 + $0x360] sm:$0xff]
    %v204 = vld [vmem:[#allocation2 + $0x368] sm:$0xff]
    %v205 = vld [vmem:[#allocation2 + $0x370] sm:$0xff]
    %v206 = vld [vmem:[#allocation2 + $0x378] sm:$0xff]
    %v207 = vld [vmem:[#allocation2 + $0x380] sm:$0xff]
    %v208 = vld [vmem:[#allocation2 + $0x388] sm:$0xff]
    %v209 = vld [vmem:[#allocation2 + $0x390] sm:$0xff]
    %v210 = vld [vmem:[#allocation2 + $0x398] sm:$0xff]
    %v211 = vld [vmem:[#allocation2 + $0x3a0] sm:$0xff]
    %v212 = vld [vmem:[#allocation2 + $0x3a8] sm:$0xff]
    %v213 = vld [vmem:[#allocation2 + $0x3b0] sm:$0xff]
    %v214 = vld [vmem:[#allocation2 + $0x3b8] sm:$0xff]
    %v215 = vld [vmem:[#allocation2 + $0x3c0] sm:$0xff]
    %v216 = vld [vmem:[#allocation2 + $0x3c8] sm:$0xff]
    %v217 = vld [vmem:[#allocation2 + $0x3d0] sm:$0xff]
    %v218 = vld [vmem:[#allocation2 + $0x3d8] sm:$0xff]
    %v219 = vld [vmem:[#allocation2 + $0x3e0] sm:$0xff]
    %v220 = vld [vmem:[#allocation2 + $0x3e8] sm:$0xff]
    %v221 = vld [vmem:[#allocation2 + $0x3f0] sm:$0xff]
    %v222 = vld [vmem:[#allocation2 + $0x3f8] sm:$0xff]
    %v223 = vld [vmem:[#allocation2 + $0x400] sm:$0xff]
    %v224 = vld [vmem:[#allocation2 + $0x408] sm:$0xff]
    %v225 = vld [vmem:[#allocation2 + $0x410] sm:$0xff]
    %v226 = vld [vmem:[#allocation2 + $0x418] sm:$0xff]
    %v227 = vld [vmem:[#allocation2 + $0x420] sm:$0xff]
    %v228 = vld [vmem:[#allocation2 + $0x428] sm:$0xff]
    %v229 = vld [vmem:[#allocation2 + $0x430] sm:$0xff]
    %v230 = vld [vmem:[#allocation2 + $0x438] sm:$0xff]
    %v231 = vld [vmem:[#allocation2 + $0x440] sm:$0xff]
    %v232 = vld [vmem:[#allocation2 + $0x448] sm:$0xff]
    %v233 = vld [vmem:[#allocation2 + $0x450] sm:$0xff]
    %v234 = vld [vmem:[#allocation2 + $0x458] sm:$0xff]
    %v235 = vld [vmem:[#allocation2 + $0x460] sm:$0xff]
    %v236 = vld [vmem:[#allocation2 + $0x468] sm:$0xff]
    %v237 = vld [vmem:[#allocation2 + $0x470] sm:$0xff]
    %v238 = vld [vmem:[#allocation2 + $0x478] sm:$0xff]
    %v239 = vld [vmem:[#allocation2 + $0x480] sm:$0xff]
    %v240 = vld [vmem:[#allocation2 + $0x488] sm:$0xff]
    %v241 = vld [vmem:[#allocation2 + $0x490] sm:$0xff]
    %v242 = vld [vmem:[#allocation2 + $0x498] sm:$0xff]
    %v243 = vld [vmem:[#allocation2 + $0x4a0] sm:$0xff]
    %v244 = vld [vmem:[#allocation2 + $0x4a8] sm:$0xff]
    %v245 = vld [vmem:[#allocation2 + $0x4b0] sm:$0xff]
    %v246 = vld [vmem:[#allocation2 + $0x4b8] sm:$0xff]
    %v247 = vld [vmem:[#allocation2 + $0x4c0] sm:$0xff]
    %v248 = vld [vmem:[#allocation2 + $0x4c8] sm:$0xff]
    %v249 = vld [vmem:[#allocation2 + $0x4d0] sm:$0xff]
    %v250 = vld [vmem:[#allocation2 + $0x4d8] sm:$0xff]
    %v251 = vld [vmem:[#allocation2 + $0x4e0] sm:$0xff]
    %v252 = vld [vmem:[#allocation2 + $0x4e8] sm:$0xff]
    %v253 = vld [vmem:[#allocation2 + $0x4f0] sm:$0xff]
    %v254 = vld [vmem:[#allocation2 + $0x4f8] sm:$0xff]
    %v255 = vld [vmem:[#allocation2 + $0x500] sm:$0xff]
    %v256 = vld [vmem:[#allocation2 + $0x508] sm:$0xff]
    %v257 = vld [vmem:[#allocation2 + $0x510] sm:$0xff]
    %v258 = vld [vmem:[#allocation2 + $0x518] sm:$0xff]
    %v259 = vld [vmem:[#allocation2 + $0x520] sm:$0xff]
    %v260 = vld [vmem:[#allocation2 + $0x528] sm:$0xff]
    %v261 = vld [vmem:[#allocation2 + $0x530] sm:$0xff]
    %v262 = vld [vmem:[#allocation2 + $0x538] sm:$0xff]
    %v263 = vld [vmem:[#allocation2 + $0x540] sm:$0xff]
    %v264 = vld [vmem:[#allocation2 + $0x548] sm:$0xff]
    %v265 = vld [vmem:[#allocation2 + $0x550] sm:$0xff]
    %v266 = vld [vmem:[#allocation2 + $0x558] sm:$0xff]
    %v267 = vld [vmem:[#allocation2 + $0x560] sm:$0xff]
    %v268 = vld [vmem:[#allocation2 + $0x568] sm:$0xff]
    %v269 = vld [vmem:[#allocation2 + $0x570] sm:$0xff]
    %v270 = vld [vmem:[#allocation2 + $0x578] sm:$0xff]
    %v271 = vld [vmem:[#allocation2 + $0x580] sm:$0xff]
    %v272 = vld [vmem:[#allocation2 + $0x588] sm:$0xff]
    %v273 = vld [vmem:[#allocation2 + $0x590] sm:$0xff]
    %v274 = vld [vmem:[#allocation2 + $0x598] sm:$0xff]
    %v275 = vld [vmem:[#allocation2 + $0x5a0] sm:$0xff]
    %v276 = vld [vmem:[#allocation2 + $0x5a8] sm:$0xff]
    %v277 = vld [vmem:[#allocation2 + $0x5b0] sm:$0xff]
    %v278 = vld [vmem:[#allocation2 + $0x5b8] sm:$0xff]
    %v279 = vld [vmem:[#allocation2 + $0x5c0] sm:$0xff]
    %v280 = vld [vmem:[#allocation2 + $0x5c8] sm:$0xff]
    %v281 = vld [vmem:[#allocation2 + $0x5d0] sm:$0xff]
    %v282 = vld [vmem:[#allocation2 + $0x5d8] sm:$0xff]
    %v283 = vld [vmem:[#allocation2 + $0x5e0] sm:$0xff]
    %v284 = vld [vmem:[#allocation2 + $0x5e8] sm:$0xff]
    %v285 = vld [vmem:[#allocation2 + $0x5f0] sm:$0xff]
    %v286 = vld [vmem:[#allocation2 + $0x5f8] sm:$0xff]
    %v287 = vld [vmem:[#allocation2 + $0x600] sm:$0xff]
    %v288 = vld [vmem:[#allocation2 + $0x608] sm:$0xff]
    %v289 = vld [vmem:[#allocation2 + $0x610] sm:$0xff]
    %v290 = vld [vmem:[#allocation2 + $0x618] sm:$0xff]
    %v291 = vld [vmem:[#allocation2 + $0x620] sm:$0xff]
    %v292 = vld [vmem:[#allocation2 + $0x628] sm:$0xff]
    %v293 = vld [vmem:[#allocation2 + $0x630] sm:$0xff]
    %v294 = vld [vmem:[#allocation2 + $0x638] sm:$0xff]
    %v295 = vld [vmem:[#allocation2 + $0x640] sm:$0xff]
    %v296 = vld [vmem:[#allocation2 + $0x648] sm:$0xff]
    %v297 = vld [vmem:[#allocation2 + $0x650] sm:$0xff]
    %v298 = vld [vmem:[#allocation2 + $0x658] sm:$0xff]
    %v299 = vld [vmem:[#allocation2 + $0x660] sm:$0xff]
    %v300 = vld [vmem:[#allocation2 + $0x668] sm:$0xff]
    %v301 = vld [vmem:[#allocation2 + $0x670] sm:$0xff]
    %v302 = vld [vmem:[#allocation2 + $0x678] sm:$0xff]
    %v303 = vld [vmem:[#allocation2 + $0x680] sm:$0xff]
    %v304 = vld [vmem:[#allocation2 + $0x688] sm:$0xff]
    %v305 = vld [vmem:[#allocation2 + $0x690] sm:$0xff]
    %v306 = vld [vmem:[#allocation2 + $0x698] sm:$0xff]
    %v307 = vld [vmem:[#allocation2 + $0x6a0] sm:$0xff]
    %v308 = vld [vmem:[#allocation2 + $0x6a8] sm:$0xff]
    %v309 = vld [vmem:[#allocation2 + $0x6b0] sm:$0xff]
    %v310 = vld [vmem:[#allocation2 + $0x6b8] sm:$0xff]
    %v311 = vld [vmem:[#allocation2 + $0x6c0] sm:$0xff]
    %v312 = vld [vmem:[#allocation2 + $0x6c8] sm:$0xff]
    %v313 = vld [vmem:[#allocation2 + $0x6d0] sm:$0xff]
    %v314 = vld [vmem:[#allocation2 + $0x6d8] sm:$0xff]
    %v315 = vld [vmem:[#allocation2 + $0x6e0] sm:$0xff]
    %v316 = vld [vmem:[#allocation2 + $0x6e8] sm:$0xff]
    %v317 = vld [vmem:[#allocation2 + $0x6f0] sm:$0xff]
    %v318 = vld [vmem:[#allocation2 + $0x6f8] sm:$0xff]
    %v319 = vld [vmem:[#allocation2 + $0x700] sm:$0xff]
    %v320 = vld [vmem:[#allocation2 + $0x708] sm:$0xff]
    %v321 = vld [vmem:[#allocation2 + $0x710] sm:$0xff]
    %v322 = vld [vmem:[#allocation2 + $0x718] sm:$0xff]
    %v323 = vld [vmem:[#allocation2 + $0x720] sm:$0xff]
    %v324 = vld [vmem:[#allocation2 + $0x728] sm:$0xff]
    %v325 = vld [vmem:[#allocation2 + $0x730] sm:$0xff]
    %v326 = vld [vmem:[#allocation2 + $0x738] sm:$0xff]
    %v327 = vld [vmem:[#allocation2 + $0x740] sm:$0xff]
    %v328 = vld [vmem:[#allocation2 + $0x748] sm:$0xff]
    %v329 = vld [vmem:[#allocation2 + $0x750] sm:$0xff]
    %v330 = vld [vmem:[#allocation2 + $0x758] sm:$0xff]
    %v331 = vld [vmem:[#allocation2 + $0x760] sm:$0xff]
    %v332 = vld [vmem:[#allocation2 + $0x768] sm:$0xff]
    %v333 = vld [vmem:[#allocation2 + $0x770] sm:$0xff]
    %v334 = vld [vmem:[#allocation2 + $0x778] sm:$0xff]
    %v335 = vld [vmem:[%s2] sm:$0x7]
    %v337 = vlaneseq
    %v338 = vshrl.u32 %v337, 7
    %v339 = vsub.s32 0, %v338
    %v340 = vrot.slane %v335, %v339
    %v341 = vlaneseq
    %v342 = vshrl.u32 %v341, 7
    %v343 = vsub.s32 1, %v342
    %v344 = vrot.slane %v335, %v343
    %v345 = vlaneseq
    %v346 = vshrl.u32 %v345, 7
    %v347 = vsub.s32 2, %v346
    %v348 = vrot.slane %v335, %v347
    %v354 = vcombine.high %v93, %v93
    %v356 = vunpack.c.l.s4 1983009808
    %v357 = vunpack.c.0.s8 %v356
    %v358 = vlaneseq
    %v359 = vshrl.u32 %v358, 7
    %v360 = vsub.s32 %v357, %v359
    %v361 = vrot.slane %v93, %v360
    %v363 = vunpack.c.l.s4 1983009808
    %v364 = vunpack.c.0.s8 %v363
    %v365 = vlaneseq
    %v366 = vshrl.u32 %v365, 7
    %v367 = vsub.s32 %v364, %v366
    %v368 = vrot.slane %v354, %v367
    %v369 = vcombine.high %v361, %v361
    %v370 = vcombine.high %v368, %v368
    %v372 = vunpack.c.l.s4 1983009808
    %v373 = vunpack.c.0.s8 %v372
    %v374 = vlaneseq
    %v375 = vshrl.u32 %v374, 7
    %v376 = vsub.s32 %v373, %v375
    %v377 = vrot.slane %v94, %v376
    %383 = vmatprep.subr.mxu0 %v141
    %384 = vmatpush1.msra.mxu0 %v140
    %385 = vmatprep.subr.mxu0 %v138
    %386 = vmatpush1.msra.mxu0 %v137
    %387 = vmatprep.subr.mxu0 %v135
    %388 = vmatpush1.msra.mxu0 %v134
    %389 = vmatprep.subr.mxu0 %v132
    %390 = vmatpush1.msra.mxu0 %v131
    %391 = vmatprep.subr.mxu0 %v129
    %392 = vmatpush1.msra.mxu0 %v128
    %393 = vmatprep.subr.mxu0 %v126
    %394 = vmatpush1.msra.mxu0 %v125
    %395 = vmatprep.subr.mxu0 %v123
    %396 = vmatpush1.msra.mxu0 %v122
    %397 = vmatprep.subr.mxu0 %v120
    %398 = vmatpush1.msra.mxu0 %v119
    %399 = vmatprep.subr.mxu0 %v117
    %400 = vmatpush1.msra.mxu0 %v116
    %401 = vmatprep.subr.mxu0 %v114
    %402 = vmatpush1.msra.mxu0 %v113
    %403 = vmatprep.subr.mxu0 %v111
    %404 = vmatpush1.msra.mxu0 %v110
    %405 = vmatprep.subr.mxu0 %v108
    %406 = vmatpush1.msra.mxu0 %v107
    %407 = vmatprep.subr.mxu0 %v105
    %408 = vmatpush1.msra.mxu0 %v104
    %409 = vmatprep.subr.mxu0 %v102
    %410 = vmatpush1.msra.mxu0 %v101
    %411 = vmatprep.subr.mxu0 %v99
    %412 = vmatpush1.msra.mxu0 %v98
    %413 = vmatprep.subr.mxu0 %v96
    %414 = vmatpush1.msra.mxu0 %v95
    %415 = vmatprep.subr.mxu0 %v189
    %416 = vmatpush2.msra.mxu0 %v188
    %417 = vmatprep.subr.mxu0 %v186
    %418 = vmatpush2.msra.mxu0 %v185
    %419 = vmatprep.subr.mxu0 %v183
    %420 = vmatpush2.msra.mxu0 %v182
    %421 = vmatprep.subr.mxu0 %v180
    %422 = vmatpush2.msra.mxu0 %v179
    %423 = vmatprep.subr.mxu0 %v177
    %424 = vmatpush2.msra.mxu0 %v176
    %425 = vmatprep.subr.mxu0 %v174
    %426 = vmatpush2.msra.mxu0 %v173
    %427 = vmatprep.subr.mxu0 %v171
    %428 = vmatpush2.msra.mxu0 %v170
    %429 = vmatprep.subr.mxu0 %v168
    %430 = vmatpush2.msra.mxu0 %v167
    %431 = vmatprep.subr.mxu0 %v165
    %432 = vmatpush2.msra.mxu0 %v164
    %433 = vmatprep.subr.mxu0 %v162
    %434 = vmatpush2.msra.mxu0 %v161
    %435 = vmatprep.subr.mxu0 %v159
    %436 = vmatpush2.msra.mxu0 %v158
    %437 = vmatprep.subr.mxu0 %v156
    %438 = vmatpush2.msra.mxu0 %v155
    %439 = vmatprep.subr.mxu0 %v153
    %440 = vmatpush2.msra.mxu0 %v152
    %441 = vmatprep.subr.mxu0 %v150
    %442 = vmatpush2.msra.mxu0 %v149
    %443 = vmatprep.subr.mxu0 %v147
    %444 = vmatpush2.msra.mxu0 %v146
    %445 = vmatprep.subr.mxu0 %v144
    %446 = vmatpush2.msra.mxu0 %v143
    %447 = vmatprep.mubr.f32.mxu0 %v369
    %448 = vmatmul.mubr.f32.gmra.mxu0 %v361
    %v449 = vpop.f32.mrf.mxu0
    %v450 = vadd.f32 %v340, %v449
    %v451 = vpop.f32.mrf.mxu0
    %v452 = vadd.f32 %v344, %v451
    %453 = vdwg.mxu0
    %454 = vmatprep.subr.mxu0 %v237
    %455 = vmatpush1.msra.mxu0 %v236
    %456 = vmatprep.subr.mxu0 %v234
    %457 = vmatpush1.msra.mxu0 %v233
    %458 = vmatprep.subr.mxu0 %v231
    %459 = vmatpush1.msra.mxu0 %v230
    %460 = vmatprep.subr.mxu0 %v228
    %461 = vmatpush1.msra.mxu0 %v227
    %462 = vmatprep.subr.mxu0 %v225
    %463 = vmatpush1.msra.mxu0 %v224
    %464 = vmatprep.subr.mxu0 %v222
    %465 = vmatpush1.msra.mxu0 %v221
    %466 = vmatprep.subr.mxu0 %v219
    %467 = vmatpush1.msra.mxu0 %v218
    %468 = vmatprep.subr.mxu0 %v216
    %469 = vmatpush1.msra.mxu0 %v215
    %470 = vmatprep.subr.mxu0 %v213
    %471 = vmatpush1.msra.mxu0 %v212
    %472 = vmatprep.subr.mxu0 %v210
    %473 = vmatpush1.msra.mxu0 %v209
    %474 = vmatprep.subr.mxu0 %v207
    %475 = vmatpush1.msra.mxu0 %v206
    %476 = vmatprep.subr.mxu0 %v204
    %477 = vmatpush1.msra.mxu0 %v203
    %478 = vmatprep.subr.mxu0 %v201
    %479 = vmatpush1.msra.mxu0 %v200
    %480 = vmatprep.subr.mxu0 %v198
    %481 = vmatpush1.msra.mxu0 %v197
    %482 = vmatprep.subr.mxu0 %v195
    %483 = vmatpush1.msra.mxu0 %v194
    %484 = vmatprep.subr.mxu0 %v192
    %485 = vmatpush1.msra.mxu0 %v191
    %486 = vmatprep.subr.mxu0 %v285
    %487 = vmatpush2.msra.mxu0 %v284
    %488 = vmatprep.subr.mxu0 %v282
    %489 = vmatpush2.msra.mxu0 %v281
    %490 = vmatprep.subr.mxu0 %v279
    %491 = vmatpush2.msra.mxu0 %v278
    %492 = vmatprep.subr.mxu0 %v276
    %493 = vmatpush2.msra.mxu0 %v275
    %494 = vmatprep.subr.mxu0 %v273
    %495 = vmatpush2.msra.mxu0 %v272
    %496 = vmatprep.subr.mxu0 %v270
    %497 = vmatpush2.msra.mxu0 %v269
    %498 = vmatprep.subr.mxu0 %v267
    %499 = vmatpush2.msra.mxu0 %v266
    %500 = vmatprep.subr.mxu0 %v264
    %501 = vmatpush2.msra.mxu0 %v263
    %502 = vmatprep.subr.mxu0 %v261
    %503 = vmatpush2.msra.mxu0 %v260
    %504 = vmatprep.subr.mxu0 %v258
    %505 = vmatpush2.msra.mxu0 %v257
    %506 = vmatprep.subr.mxu0 %v255
    %507 = vmatpush2.msra.mxu0 %v254
    %508 = vmatprep.subr.mxu0 %v252
    %509 = vmatpush2.msra.mxu0 %v251
    %510 = vmatprep.subr.mxu0 %v249
    %511 = vmatpush2.msra.mxu0 %v248
    %512 = vmatprep.subr.mxu0 %v246
    %513 = vmatpush2.msra.mxu0 %v245
    %514 = vmatprep.subr.mxu0 %v243
    %515 = vmatpush2.msra.mxu0 %v242
    %516 = vmatprep.subr.mxu0 %v240
    %517 = vmatpush2.msra.mxu0 %v239
    %518 = vmatprep.mubr.f32.mxu0 %v370
    %519 = vmatmul.mubr.f32.gmra.mxu0 %v368
    %v520 = vpop.f32.mrf.mxu0
    %v521 = vadd.f32 %v450, %v520
    %v522 = vpop.f32.mrf.mxu0
    %v523 = vadd.f32 %v452, %v522
    %524 = vdwg.mxu0
    %525 = vmatprep.subr.mxu0 %v333
    %526 = vmatpush1.msra.mxu0 %v332
    %527 = vmatprep.subr.mxu0 %v330
    %528 = vmatpush1.msra.mxu0 %v329
    %529 = vmatprep.subr.mxu0 %v327
    %530 = vmatpush1.msra.mxu0 %v326
    %531 = vmatprep.subr.mxu0 %v324
    %532 = vmatpush1.msra.mxu0 %v323
    %533 = vmatprep.subr.mxu0 %v321
    %534 = vmatpush1.msra.mxu0 %v320
    %535 = vmatprep.subr.mxu0 %v318
    %536 = vmatpush1.msra.mxu0 %v317
    %537 = vmatprep.subr.mxu0 %v315
    %538 = vmatpush1.msra.mxu0 %v314
    %539 = vmatprep.subr.mxu0 %v312
    %540 = vmatpush1.msra.mxu0 %v311
    %541 = vmatprep.subr.mxu0 %v309
    %542 = vmatpush1.msra.mxu0 %v308
    %543 = vmatprep.subr.mxu0 %v306
    %544 = vmatpush1.msra.mxu0 %v305
    %545 = vmatprep.subr.mxu0 %v303
    %546 = vmatpush1.msra.mxu0 %v302
    %547 = vmatprep.subr.mxu0 %v300
    %548 = vmatpush1.msra.mxu0 %v299
    %549 = vmatprep.subr.mxu0 %v297
    %550 = vmatpush1.msra.mxu0 %v296
    %551 = vmatprep.subr.mxu0 %v294
    %552 = vmatpush1.msra.mxu0 %v293
    %553 = vmatprep.subr.mxu0 %v291
    %554 = vmatpush1.msra.mxu0 %v290
    %555 = vmatprep.subr.mxu0 %v288
    %556 = vmatpush1.msra.mxu0 %v287
    %557 = vmatprep.subr.mxu0 0.0
    %558 = vmatpush2.msra.mxu0 0.0
    %559 = vmatprep.subr.mxu0 0.0
    %560 = vmatpush2.msra.mxu0 0.0
    %561 = vmatprep.subr.mxu0 0.0
    %562 = vmatpush2.msra.mxu0 0.0
    %563 = vmatprep.subr.mxu0 0.0
    %564 = vmatpush2.msra.mxu0 0.0
    %565 = vmatprep.subr.mxu0 0.0
    %566 = vmatpush2.msra.mxu0 0.0
    %567 = vmatprep.subr.mxu0 0.0
    %568 = vmatpush2.msra.mxu0 0.0
    %569 = vmatprep.subr.mxu0 0.0
    %570 = vmatpush2.msra.mxu0 0.0
    %571 = vmatprep.subr.mxu0 0.0
    %572 = vmatpush2.msra.mxu0 0.0
    %573 = vmatprep.subr.mxu0 0.0
    %574 = vmatpush2.msra.mxu0 0.0
    %575 = vmatprep.subr.mxu0 0.0
    %576 = vmatpush2.msra.mxu0 0.0
    %577 = vmatprep.subr.mxu0 0.0
    %578 = vmatpush2.msra.mxu0 0.0
    %579 = vmatprep.subr.mxu0 0.0
    %580 = vmatpush2.msra.mxu0 0.0
    %581 = vmatprep.subr.mxu0 0.0
    %582 = vmatpush2.msra.mxu0 0.0
    %583 = vmatprep.subr.mxu0 0.0
    %584 = vmatpush2.msra.mxu0 0.0
    %585 = vmatprep.subr.mxu0 0.0
    %586 = vmatpush2.msra.mxu0 0.0
    %587 = vmatprep.subr.mxu0 0.0
    %588 = vmatpush2.msra.mxu0 0.0
    %589 = vmatprep.mubr.f32.mxu0 0.0
    %590 = vmatmul.mubr.f32.gmra.mxu0 %v377
    %v591 = vpop.f32.mrf.mxu0
    %v592 = vadd.f32 %v521, %v591
    %v593 = vpop.f32.mrf.mxu0
    %v594 = vadd.f32 %v523, %v593
    %595 = vdwg.mxu0
    %596 = vmatprep.subr.mxu0 0.0
    %597 = vmatpush1.msra.mxu0 %v142
    %598 = vmatprep.subr.mxu0 0.0
    %599 = vmatpush1.msra.mxu0 %v139
    %600 = vmatprep.subr.mxu0 0.0
    %601 = vmatpush1.msra.mxu0 %v136
    %602 = vmatprep.subr.mxu0 0.0
    %603 = vmatpush1.msra.mxu0 %v133
    %604 = vmatprep.subr.mxu0 0.0
    %605 = vmatpush1.msra.mxu0 %v130
    %606 = vmatprep.subr.mxu0 0.0
    %607 = vmatpush1.msra.mxu0 %v127
    %608 = vmatprep.subr.mxu0 0.0
    %609 = vmatpush1.msra.mxu0 %v124
    %610 = vmatprep.subr.mxu0 0.0
    %611 = vmatpush1.msra.mxu0 %v121
    %612 = vmatprep.subr.mxu0 0.0
    %613 = vmatpush1.msra.mxu0 %v118
    %614 = vmatprep.subr.mxu0 0.0
    %615 = vmatpush1.msra.mxu0 %v115
    %616 = vmatprep.subr.mxu0 0.0
    %617 = vmatpush1.msra.mxu0 %v112
    %618 = vmatprep.subr.mxu0 0.0
    %619 = vmatpush1.msra.mxu0 %v109
    %620 = vmatprep.subr.mxu0 0.0
    %621 = vmatpush1.msra.mxu0 %v106
    %622 = vmatprep.subr.mxu0 0.0
    %623 = vmatpush1.msra.mxu0 %v103
    %624 = vmatprep.subr.mxu0 0.0
    %625 = vmatpush1.msra.mxu0 %v100
    %626 = vmatprep.subr.mxu0 0.0
    %627 = vmatpush1.msra.mxu0 %v97
    %628 = vmatprep.subr.mxu0 0.0
    %629 = vmatpush2.msra.mxu0 %v190
    %630 = vmatprep.subr.mxu0 0.0
    %631 = vmatpush2.msra.mxu0 %v187
    %632 = vmatprep.subr.mxu0 0.0
    %633 = vmatpush2.msra.mxu0 %v184
    %634 = vmatprep.subr.mxu0 0.0
    %635 = vmatpush2.msra.mxu0 %v181
    %636 = vmatprep.subr.mxu0 0.0
    %637 = vmatpush2.msra.mxu0 %v178
    %638 = vmatprep.subr.mxu0 0.0
    %639 = vmatpush2.msra.mxu0 %v175
    %640 = vmatprep.subr.mxu0 0.0
    %641 = vmatpush2.msra.mxu0 %v172
    %642 = vmatprep.subr.mxu0 0.0
    %643 = vmatpush2.msra.mxu0 %v169
    %644 = vmatprep.subr.mxu0 0.0
    %645 = vmatpush2.msra.mxu0 %v166
    %646 = vmatprep.subr.mxu0 0.0
    %647 = vmatpush2.msra.mxu0 %v163
    %648 = vmatprep.subr.mxu0 0.0
    %649 = vmatpush2.msra.mxu0 %v160
    %650 = vmatprep.subr.mxu0 0.0
    %651 = vmatpush2.msra.mxu0 %v157
    %652 = vmatprep.subr.mxu0 0.0
    %653 = vmatpush2.msra.mxu0 %v154
    %654 = vmatprep.subr.mxu0 0.0
    %655 = vmatpush2.msra.mxu0 %v151
    %656 = vmatprep.subr.mxu0 0.0
    %657 = vmatpush2.msra.mxu0 %v148
    %658 = vmatprep.subr.mxu0 0.0
    %659 = vmatpush2.msra.mxu0 %v145
    %660 = vmatprep.mubr.f32.mxu0 %v369
    %661 = vmatmul.mubr.f32.gmra.mxu0 %v361
    %v662 = vpop.f32.mrf.mxu0
    %v663 = vadd.f32 %v348, %v662
    %v664 = vpop.f32.mrf.mxu0
    %665 = vdwg.mxu0
    %666 = vmatprep.subr.mxu0 0.0
    %667 = vmatpush1.msra.mxu0 %v238
    %668 = vmatprep.subr.mxu0 0.0
    %669 = vmatpush1.msra.mxu0 %v235
    %670 = vmatprep.subr.mxu0 0.0
    %671 = vmatpush1.msra.mxu0 %v232
    %672 = vmatprep.subr.mxu0 0.0
    %673 = vmatpush1.msra.mxu0 %v229
    %674 = vmatprep.subr.mxu0 0.0
    %675 = vmatpush1.msra.mxu0 %v226
    %676 = vmatprep.subr.mxu0 0.0
    %677 = vmatpush1.msra.mxu0 %v223
    %678 = vmatprep.subr.mxu0 0.0
    %679 = vmatpush1.msra.mxu0 %v220
    %680 = vmatprep.subr.mxu0 0.0
    %681 = vmatpush1.msra.mxu0 %v217
    %682 = vmatprep.subr.mxu0 0.0
    %683 = vmatpush1.msra.mxu0 %v214
    %684 = vmatprep.subr.mxu0 0.0
    %685 = vmatpush1.msra.mxu0 %v211
    %686 = vmatprep.subr.mxu0 0.0
    %687 = vmatpush1.msra.mxu0 %v208
    %688 = vmatprep.subr.mxu0 0.0
    %689 = vmatpush1.msra.mxu0 %v205
    %690 = vmatprep.subr.mxu0 0.0
    %691 = vmatpush1.msra.mxu0 %v202
    %692 = vmatprep.subr.mxu0 0.0
    %693 = vmatpush1.msra.mxu0 %v199
    %694 = vmatprep.subr.mxu0 0.0
    %695 = vmatpush1.msra.mxu0 %v196
    %696 = vmatprep.subr.mxu0 0.0
    %697 = vmatpush1.msra.mxu0 %v193
    %698 = vmatprep.subr.mxu0 0.0
    %699 = vmatpush2.msra.mxu0 %v286
    %700 = vmatprep.subr.mxu0 0.0
    %701 = vmatpush2.msra.mxu0 %v283
    %702 = vmatprep.subr.mxu0 0.0
    %703 = vmatpush2.msra.mxu0 %v280
    %704 = vmatprep.subr.mxu0 0.0
    %705 = vmatpush2.msra.mxu0 %v277
    %706 = vmatprep.subr.mxu0 0.0
    %707 = vmatpush2.msra.mxu0 %v274
    %708 = vmatprep.subr.mxu0 0.0
    %709 = vmatpush2.msra.mxu0 %v271
    %710 = vmatprep.subr.mxu0 0.0
    %711 = vmatpush2.msra.mxu0 %v268
    %712 = vmatprep.subr.mxu0 0.0
    %713 = vmatpush2.msra.mxu0 %v265
    %714 = vmatprep.subr.mxu0 0.0
    %715 = vmatpush2.msra.mxu0 %v262
    %716 = vmatprep.subr.mxu0 0.0
    %717 = vmatpush2.msra.mxu0 %v259
    %718 = vmatprep.subr.mxu0 0.0
    %719 = vmatpush2.msra.mxu0 %v256
    %720 = vmatprep.subr.mxu0 0.0
    %721 = vmatpush2.msra.mxu0 %v253
    %722 = vmatprep.subr.mxu0 0.0
    %723 = vmatpush2.msra.mxu0 %v250
    %724 = vmatprep.subr.mxu0 0.0
    %725 = vmatpush2.msra.mxu0 %v247
    %726 = vmatprep.subr.mxu0 0.0
    %727 = vmatpush2.msra.mxu0 %v244
    %728 = vmatprep.subr.mxu0 0.0
    %729 = vmatpush2.msra.mxu0 %v241
    %730 = vmatprep.mubr.f32.mxu0 %v370
    %731 = vmatmul.mubr.f32.gmra.mxu0 %v368
    %v732 = vpop.f32.mrf.mxu0
    %v733 = vadd.f32 %v663, %v732
    %v734 = vpop.f32.mrf.mxu0
    %735 = vdwg.mxu0
    %736 = vmatprep.subr.mxu0 0.0
    %737 = vmatpush1.msra.mxu0 %v334
    %738 = vmatprep.subr.mxu0 0.0
    %739 = vmatpush1.msra.mxu0 %v331
    %740 = vmatprep.subr.mxu0 0.0
    %741 = vmatpush1.msra.mxu0 %v328
    %742 = vmatprep.subr.mxu0 0.0
    %743 = vmatpush1.msra.mxu0 %v325
    %744 = vmatprep.subr.mxu0 0.0
    %745 = vmatpush1.msra.mxu0 %v322
    %746 = vmatprep.subr.mxu0 0.0
    %747 = vmatpush1.msra.mxu0 %v319
    %748 = vmatprep.subr.mxu0 0.0
    %749 = vmatpush1.msra.mxu0 %v316
    %750 = vmatprep.subr.mxu0 0.0
    %751 = vmatpush1.msra.mxu0 %v313
    %752 = vmatprep.subr.mxu0 0.0
    %753 = vmatpush1.msra.mxu0 %v310
    %754 = vmatprep.subr.mxu0 0.0
    %755 = vmatpush1.msra.mxu0 %v307
    %756 = vmatprep.subr.mxu0 0.0
    %757 = vmatpush1.msra.mxu0 %v304
    %758 = vmatprep.subr.mxu0 0.0
    %759 = vmatpush1.msra.mxu0 %v301
    %760 = vmatprep.subr.mxu0 0.0
    %761 = vmatpush1.msra.mxu0 %v298
    %762 = vmatprep.subr.mxu0 0.0
    %763 = vmatpush1.msra.mxu0 %v295
    %764 = vmatprep.subr.mxu0 0.0
    %765 = vmatpush1.msra.mxu0 %v292
    %766 = vmatprep.subr.mxu0 0.0
    %767 = vmatpush1.msra.mxu0 %v289
    %768 = vmatprep.subr.mxu0 0.0
    %769 = vmatpush2.msra.mxu0 0.0
    %770 = vmatprep.subr.mxu0 0.0
    %771 = vmatpush2.msra.mxu0 0.0
    %772 = vmatprep.subr.mxu0 0.0
    %773 = vmatpush2.msra.mxu0 0.0
    %774 = vmatprep.subr.mxu0 0.0
    %775 = vmatpush2.msra.mxu0 0.0
    %776 = vmatprep.subr.mxu0 0.0
    %777 = vmatpush2.msra.mxu0 0.0
    %778 = vmatprep.subr.mxu0 0.0
    %779 = vmatpush2.msra.mxu0 0.0
    %780 = vmatprep.subr.mxu0 0.0
    %781 = vmatpush2.msra.mxu0 0.0
    %782 = vmatprep.subr.mxu0 0.0
    %783 = vmatpush2.msra.mxu0 0.0
    %784 = vmatprep.subr.mxu0 0.0
    %785 = vmatpush2.msra.mxu0 0.0
    %786 = vmatprep.subr.mxu0 0.0
    %787 = vmatpush2.msra.mxu0 0.0
    %788 = vmatprep.subr.mxu0 0.0
    %789 = vmatpush2.msra.mxu0 0.0
    %790 = vmatprep.subr.mxu0 0.0
    %791 = vmatpush2.msra.mxu0 0.0
    %792 = vmatprep.subr.mxu0 0.0
    %793 = vmatpush2.msra.mxu0 0.0
    %794 = vmatprep.subr.mxu0 0.0
    %795 = vmatpush2.msra.mxu0 0.0
    %796 = vmatprep.subr.mxu0 0.0
    %797 = vmatpush2.msra.mxu0 0.0
    %798 = vmatprep.subr.mxu0 0.0
    %799 = vmatpush2.msra.mxu0 0.0
    %800 = vmatprep.mubr.f32.mxu0 0.0
    %801 = vmatmul.mubr.f32.gmra.mxu0 %v377
    %v802 = vpop.f32.mrf.mxu0
    %v803 = vadd.f32 %v733, %v802
    %v804 = vpop.f32.mrf.mxu0
    %805 = vdwg.mxu0
    %v806 = vmax.f32 %v592, 0.0
    %v807 = vmax.f32 %v594, 0.0
    %v808 = vmax.f32 %v803, 0.0
    %v809 = vld [vmem:[#allocation4] sm:$0xff]
    %v810 = vld [vmem:[#allocation4 + $0x8] sm:$0xff]
    %v811 = vld [vmem:[#allocation4 + $0x10] sm:$0xff]
    %v812 = vld [vmem:[#allocation4 + $0x18] sm:$0xff]
    %v813 = vld [vmem:[#allocation4 + $0x20] sm:$0xff]
    %v814 = vld [vmem:[#allocation4 + $0x28] sm:$0xff]
    %v815 = vld [vmem:[#allocation4 + $0x30] sm:$0xff]
    %v816 = vld [vmem:[#allocation4 + $0x38] sm:$0xff]
    %v817 = vld [vmem:[#allocation4 + $0x40] sm:$0xff]
    %v818 = vld [vmem:[#allocation4 + $0x48] sm:$0xff]
    %v819 = vld [vmem:[#allocation4 + $0x50] sm:$0xff]
    %v820 = vld [vmem:[#allocation4 + $0x58] sm:$0xff]
    %v821 = vld [vmem:[#allocation4 + $0x60] sm:$0xff]
    %v822 = vld [vmem:[#allocation4 + $0x68] sm:$0xff]
    %v823 = vld [vmem:[#allocation4 + $0x70] sm:$0xff]
    %v824 = vld [vmem:[#allocation4 + $0x78] sm:$0xff]
    %v825 = vld [vmem:[#allocation4 + $0x80] sm:$0xff]
    %v826 = vld [vmem:[#allocation4 + $0x88] sm:$0xff]
    %v827 = vld [vmem:[#allocation4 + $0x90] sm:$0xff]
    %v828 = vld [vmem:[#allocation4 + $0x98] sm:$0xff]
    %v829 = vld [vmem:[#allocation4 + $0xa0] sm:$0xff]
    %v830 = vld [vmem:[#allocation4 + $0xa8] sm:$0xff]
    %v831 = vld [vmem:[#allocation4 + $0xb0] sm:$0xff]
    %v832 = vld [vmem:[#allocation4 + $0xb8] sm:$0xff]
    %v833 = vld [vmem:[#allocation4 + $0xc0] sm:$0xff]
    %v834 = vld [vmem:[#allocation4 + $0xc8] sm:$0xff]
    %v835 = vld [vmem:[#allocation4 + $0xd0] sm:$0xff]
    %v836 = vld [vmem:[#allocation4 + $0xd8] sm:$0xff]
    %v837 = vld [vmem:[#allocation4 + $0xe0] sm:$0xff]
    %v838 = vld [vmem:[#allocation4 + $0xe8] sm:$0xff]
    %v839 = vld [vmem:[#allocation4 + $0xf0] sm:$0xff]
    %v840 = vld [vmem:[#allocation4 + $0xf8] sm:$0xff]
    %v841 = vld [vmem:[#allocation4 + $0x100] sm:$0xff]
    %v842 = vld [vmem:[#allocation4 + $0x108] sm:$0xff]
    %v843 = vld [vmem:[#allocation4 + $0x110] sm:$0xff]
    %v844 = vld [vmem:[#allocation4 + $0x118] sm:$0xff]
    %v845 = vld [vmem:[#allocation4 + $0x120] sm:$0xff]
    %v846 = vld [vmem:[#allocation4 + $0x128] sm:$0xff]
    %v847 = vld [vmem:[#allocation4 + $0x130] sm:$0xff]
    %v848 = vld [vmem:[#allocation4 + $0x138] sm:$0xff]
    %v849 = vld [vmem:[#allocation4 + $0x140] sm:$0xff]
    %v850 = vld [vmem:[#allocation4 + $0x148] sm:$0xff]
    %v851 = vld [vmem:[#allocation4 + $0x150] sm:$0xff]
    %v852 = vld [vmem:[#allocation4 + $0x158] sm:$0xff]
    %v853 = vld [vmem:[#allocation4 + $0x160] sm:$0xff]
    %v854 = vld [vmem:[#allocation4 + $0x168] sm:$0xff]
    %v855 = vld [vmem:[#allocation4 + $0x170] sm:$0xff]
    %v856 = vld [vmem:[#allocation4 + $0x178] sm:$0xff]
    %v857 = vld [vmem:[%s4] sm:$0x1]
    %v859 = vlaneseq
    %v860 = vshrl.u32 %v859, 7
    %v861 = vsub.s32 0, %v860
    %v862 = vrot.slane %v857, %v861
    %864 = vmatprep.subr.mxu0 0.0
    %865 = vmatpush1.msra.mxu0 %v824
    %866 = vmatprep.subr.mxu0 0.0
    %867 = vmatpush1.msra.mxu0 %v823
    %868 = vmatprep.subr.mxu0 0.0
    %869 = vmatpush1.msra.mxu0 %v822
    %870 = vmatprep.subr.mxu0 0.0
    %871 = vmatpush1.msra.mxu0 %v821
    %872 = vmatprep.subr.mxu0 0.0
    %873 = vmatpush1.msra.mxu0 %v820
    %874 = vmatprep.subr.mxu0 0.0
    %875 = vmatpush1.msra.mxu0 %v819
    %876 = vmatprep.subr.mxu0 0.0
    %877 = vmatpush1.msra.mxu0 %v818
    %878 = vmatprep.subr.mxu0 0.0
    %879 = vmatpush1.msra.mxu0 %v817
    %880 = vmatprep.subr.mxu0 0.0
    %881 = vmatpush1.msra.mxu0 %v816
    %882 = vmatprep.subr.mxu0 0.0
    %883 = vmatpush1.msra.mxu0 %v815
    %884 = vmatprep.subr.mxu0 0.0
    %885 = vmatpush1.msra.mxu0 %v814
    %886 = vmatprep.subr.mxu0 0.0
    %887 = vmatpush1.msra.mxu0 %v813
    %888 = vmatprep.subr.mxu0 0.0
    %889 = vmatpush1.msra.mxu0 %v812
    %890 = vmatprep.subr.mxu0 0.0
    %891 = vmatpush1.msra.mxu0 %v811
    %892 = vmatprep.subr.mxu0 0.0
    %893 = vmatpush1.msra.mxu0 %v810
    %894 = vmatprep.subr.mxu0 0.0
    %895 = vmatpush1.msra.mxu0 %v809
    %896 = vmatprep.subr.mxu0 0.0
    %897 = vmatpush2.msra.mxu0 %v840
    %898 = vmatprep.subr.mxu0 0.0
    %899 = vmatpush2.msra.mxu0 %v839
    %900 = vmatprep.subr.mxu0 0.0
    %901 = vmatpush2.msra.mxu0 %v838
    %902 = vmatprep.subr.mxu0 0.0
    %903 = vmatpush2.msra.mxu0 %v837
    %904 = vmatprep.subr.mxu0 0.0
    %905 = vmatpush2.msra.mxu0 %v836
    %906 = vmatprep.subr.mxu0 0.0
    %907 = vmatpush2.msra.mxu0 %v835
    %908 = vmatprep.subr.mxu0 0.0
    %909 = vmatpush2.msra.mxu0 %v834
    %910 = vmatprep.subr.mxu0 0.0
    %911 = vmatpush2.msra.mxu0 %v833
    %912 = vmatprep.subr.mxu0 0.0
    %913 = vmatpush2.msra.mxu0 %v832
    %914 = vmatprep.subr.mxu0 0.0
    %915 = vmatpush2.msra.mxu0 %v831
    %916 = vmatprep.subr.mxu0 0.0
    %917 = vmatpush2.msra.mxu0 %v830
    %918 = vmatprep.subr.mxu0 0.0
    %919 = vmatpush2.msra.mxu0 %v829
    %920 = vmatprep.subr.mxu0 0.0
    %921 = vmatpush2.msra.mxu0 %v828
    %922 = vmatprep.subr.mxu0 0.0
    %923 = vmatpush2.msra.mxu0 %v827
    %924 = vmatprep.subr.mxu0 0.0
    %925 = vmatpush2.msra.mxu0 %v826
    %926 = vmatprep.subr.mxu0 0.0
    %927 = vmatpush2.msra.mxu0 %v825
    %928 = vmatprep.mubr.f32.mxu0 %v807
    %929 = vmatmul.mubr.f32.gmra.mxu0 %v806
    %v930 = vpop.f32.mrf.mxu0
    %v931 = vadd.f32 %v862, %v930
    %v932 = vpop.f32.mrf.mxu0
    %933 = vdwg.mxu0
    %934 = vmatprep.subr.mxu0 0.0
    %935 = vmatpush1.msra.mxu0 %v856
    %936 = vmatprep.subr.mxu0 0.0
    %937 = vmatpush1.msra.mxu0 %v855
    %938 = vmatprep.subr.mxu0 0.0
    %939 = vmatpush1.msra.mxu0 %v854
    %940 = vmatprep.subr.mxu0 0.0
    %941 = vmatpush1.msra.mxu0 %v853
    %942 = vmatprep.subr.mxu0 0.0
    %943 = vmatpush1.msra.mxu0 %v852
    %944 = vmatprep.subr.mxu0 0.0
    %945 = vmatpush1.msra.mxu0 %v851
    %946 = vmatprep.subr.mxu0 0.0
    %947 = vmatpush1.msra.mxu0 %v850
    %948 = vmatprep.subr.mxu0 0.0
    %949 = vmatpush1.msra.mxu0 %v849
    %950 = vmatprep.subr.mxu0 0.0
    %951 = vmatpush1.msra.mxu0 %v848
    %952 = vmatprep.subr.mxu0 0.0
    %953 = vmatpush1.msra.mxu0 %v847
    %954 = vmatprep.subr.mxu0 0.0
    %955 = vmatpush1.msra.mxu0 %v846
    %956 = vmatprep.subr.mxu0 0.0
    %957 = vmatpush1.msra.mxu0 %v845
    %958 = vmatprep.subr.mxu0 0.0
    %959 = vmatpush1.msra.mxu0 %v844
    %960 = vmatprep.subr.mxu0 0.0
    %961 = vmatpush1.msra.mxu0 %v843
    %962 = vmatprep.subr.mxu0 0.0
    %963 = vmatpush1.msra.mxu0 %v842
    %964 = vmatprep.subr.mxu0 0.0
    %965 = vmatpush1.msra.mxu0 %v841
    %966 = vmatprep.subr.mxu0 0.0
    %967 = vmatpush2.msra.mxu0 0.0
    %968 = vmatprep.subr.mxu0 0.0
    %969 = vmatpush2.msra.mxu0 0.0
    %970 = vmatprep.subr.mxu0 0.0
    %971 = vmatpush2.msra.mxu0 0.0
    %972 = vmatprep.subr.mxu0 0.0
    %973 = vmatpush2.msra.mxu0 0.0
    %974 = vmatprep.subr.mxu0 0.0
    %975 = vmatpush2.msra.mxu0 0.0
    %976 = vmatprep.subr.mxu0 0.0
    %977 = vmatpush2.msra.mxu0 0.0
    %978 = vmatprep.subr.mxu0 0.0
    %979 = vmatpush2.msra.mxu0 0.0
    %980 = vmatprep.subr.mxu0 0.0
    %981 = vmatpush2.msra.mxu0 0.0
    %982 = vmatprep.subr.mxu0 0.0
    %983 = vmatpush2.msra.mxu0 0.0
    %984 = vmatprep.subr.mxu0 0.0
    %985 = vmatpush2.msra.mxu0 0.0
    %986 = vmatprep.subr.mxu0 0.0
    %987 = vmatpush2.msra.mxu0 0.0
    %988 = vmatprep.subr.mxu0 0.0
    %989 = vmatpush2.msra.mxu0 0.0
    %990 = vmatprep.subr.mxu0 0.0
    %991 = vmatpush2.msra.mxu0 0.0
    %992 = vmatprep.subr.mxu0 0.0
    %993 = vmatpush2.msra.mxu0 0.0
    %994 = vmatprep.subr.mxu0 0.0
    %995 = vmatpush2.msra.mxu0 0.0
    %996 = vmatprep.subr.mxu0 0.0
    %997 = vmatpush2.msra.mxu0 0.0
    %998 = vmatprep.mubr.f32.mxu0 0.0
    %999 = vmatmul.mubr.f32.gmra.mxu0 %v808
    %v1000 = vpop.f32.mrf.mxu0
    %v1001 = vadd.f32 %v931, %v1000
    %v1002 = vpop.f32.mrf.mxu0
    %1003 = vdwg.mxu0
    %v1004 = vmax.f32 %v1001, 0.0
    %v1005 = vld [vmem:[%s5] sm:$0xff]
    %v1006 = vld [vmem:[%s5 + $0x8] sm:$0xff]
    %v1007 = vld [vmem:[%s5 + $0x10] sm:$0xff]
    %v1008 = vld [vmem:[%s5 + $0x18] sm:$0xff]
    %v1009 = vld [vmem:[%s5 + $0x20] sm:$0xff]
    %v1010 = vld [vmem:[%s5 + $0x28] sm:$0xff]
    %v1011 = vld [vmem:[%s5 + $0x30] sm:$0xff]
    %v1012 = vld [vmem:[%s5 + $0x38] sm:$0xff]
    %v1013 = vld [vmem:[%s5 + $0x40] sm:$0xff]
    %v1014 = vld [vmem:[%s5 + $0x48] sm:$0xff]
    %v1015 = vld [vmem:[%s5 + $0x50] sm:$0xff]
    %v1016 = vld [vmem:[%s5 + $0x58] sm:$0xff]
    %v1017 = vld [vmem:[%s5 + $0x60] sm:$0xff]
    %v1018 = vld [vmem:[%s5 + $0x68] sm:$0xff]
    %v1019 = vld [vmem:[%s5 + $0x70] sm:$0xff]
    %v1020 = vld [vmem:[%s5 + $0x78] sm:$0xff]
    %v1021 = vld [vmem:[%s6] sm:$0x1]
    %v1023 = vlaneseq
    %v1024 = vshrl.u32 %v1023, 7
    %v1025 = vsub.s32 0, %v1024
    %v1026 = vrot.slane %v1021, %v1025
    %1028 = vmatprep.subr.mxu0 0.0
    %1029 = vmatpush1.msra.mxu0 %v1020
    %1030 = vmatprep.subr.mxu0 0.0
    %1031 = vmatpush1.msra.mxu0 %v1019
    %1032 = vmatprep.subr.mxu0 0.0
    %1033 = vmatpush1.msra.mxu0 %v1018
    %1034 = vmatprep.subr.mxu0 0.0
    %1035 = vmatpush1.msra.mxu0 %v1017
    %1036 = vmatprep.subr.mxu0 0.0
    %1037 = vmatpush1.msra.mxu0 %v1016
    %1038 = vmatprep.subr.mxu0 0.0
    %1039 = vmatpush1.msra.mxu0 %v1015
    %1040 = vmatprep.subr.mxu0 0.0
    %1041 = vmatpush1.msra.mxu0 %v1014
    %1042 = vmatprep.subr.mxu0 0.0
    %1043 = vmatpush1.msra.mxu0 %v1013
    %1044 = vmatprep.subr.mxu0 0.0
    %1045 = vmatpush1.msra.mxu0 %v1012
    %1046 = vmatprep.subr.mxu0 0.0
    %1047 = vmatpush1.msra.mxu0 %v1011
    %1048 = vmatprep.subr.mxu0 0.0
    %1049 = vmatpush1.msra.mxu0 %v1010
    %1050 = vmatprep.subr.mxu0 0.0
    %1051 = vmatpush1.msra.mxu0 %v1009
    %1052 = vmatprep.subr.mxu0 0.0
    %1053 = vmatpush1.msra.mxu0 %v1008
    %1054 = vmatprep.subr.mxu0 0.0
    %1055 = vmatpush1.msra.mxu0 %v1007
    %1056 = vmatprep.subr.mxu0 0.0
    %1057 = vmatpush1.msra.mxu0 %v1006
    %1058 = vmatprep.subr.mxu0 0.0
    %1059 = vmatpush1.msra.mxu0 %v1005
    %1060 = vmatprep.subr.mxu0 0.0
    %1061 = vmatpush2.msra.mxu0 0.0
    %1062 = vmatprep.subr.mxu0 0.0
    %1063 = vmatpush2.msra.mxu0 0.0
    %1064 = vmatprep.subr.mxu0 0.0
    %1065 = vmatpush2.msra.mxu0 0.0
    %1066 = vmatprep.subr.mxu0 0.0
    %1067 = vmatpush2.msra.mxu0 0.0
    %1068 = vmatprep.subr.mxu0 0.0
    %1069 = vmatpush2.msra.mxu0 0.0
    %1070 = vmatprep.subr.mxu0 0.0
    %1071 = vmatpush2.msra.mxu0 0.0
    %1072 = vmatprep.subr.mxu0 0.0
    %1073 = vmatpush2.msra.mxu0 0.0
    %1074 = vmatprep.subr.mxu0 0.0
    %1075 = vmatpush2.msra.mxu0 0.0
    %1076 = vmatprep.subr.mxu0 0.0
    %1077 = vmatpush2.msra.mxu0 0.0
    %1078 = vmatprep.subr.mxu0 0.0
    %1079 = vmatpush2.msra.mxu0 0.0
    %1080 = vmatprep.subr.mxu0 0.0
    %1081 = vmatpush2.msra.mxu0 0.0
    %1082 = vmatprep.subr.mxu0 0.0
    %1083 = vmatpush2.msra.mxu0 0.0
    %1084 = vmatprep.subr.mxu0 0.0
    %1085 = vmatpush2.msra.mxu0 0.0
    %1086 = vmatprep.subr.mxu0 0.0
    %1087 = vmatpush2.msra.mxu0 0.0
    %1088 = vmatprep.subr.mxu0 0.0
    %1089 = vmatpush2.msra.mxu0 0.0
    %1090 = vmatprep.subr.mxu0 0.0
    %1091 = vmatpush2.msra.mxu0 0.0
    %1092 = vmatprep.mubr.f32.mxu0 0.0
    %1093 = vmatmul.mubr.f32.gmra.mxu0 %v1004
    %v1094 = vpop.f32.mrf.mxu0
    %v1095 = vadd.f32 %v1026, %v1094
    %v1096 = vpop.f32.mrf.mxu0
    %1097 = vdwg.mxu0
    %v1098 = vmax.f32 %v1095, 0.0
    %v1099 = vld [vmem:[#allocation6] sm:$0xff]
    %v1100 = vld [vmem:[#allocation6 + $0x8] sm:$0xff]
    %v1101 = vld [vmem:[#allocation6 + $0x10] sm:$0xff]
    %v1102 = vld [vmem:[#allocation6 + $0x18] sm:$0xff]
    %v1103 = vld [vmem:[#allocation6 + $0x20] sm:$0xff]
    %v1104 = vld [vmem:[#allocation6 + $0x28] sm:$0xff]
    %v1105 = vld [vmem:[#allocation6 + $0x30] sm:$0xff]
    %v1106 = vld [vmem:[#allocation6 + $0x38] sm:$0xff]
    %v1107 = vld [vmem:[#allocation6 + $0x40] sm:$0xff]
    %v1108 = vld [vmem:[#allocation6 + $0x48] sm:$0xff]
    %v1109 = vld [vmem:[#allocation6 + $0x50] sm:$0xff]
    %v1110 = vld [vmem:[#allocation6 + $0x58] sm:$0xff]
    %v1111 = vld [vmem:[#allocation6 + $0x60] sm:$0xff]
    %v1112 = vld [vmem:[#allocation6 + $0x68] sm:$0xff]
    %v1113 = vld [vmem:[#allocation6 + $0x70] sm:$0xff]
    %v1114 = vld [vmem:[#allocation6 + $0x78] sm:$0xff]
    %v1115 = vld [vmem:[#allocation6 + $0x80] sm:$0xff]
    %v1116 = vld [vmem:[#allocation6 + $0x88] sm:$0xff]
    %v1117 = vld [vmem:[#allocation6 + $0x90] sm:$0xff]
    %v1118 = vld [vmem:[#allocation6 + $0x98] sm:$0xff]
    %v1119 = vld [vmem:[#allocation6 + $0xa0] sm:$0xff]
    %v1120 = vld [vmem:[#allocation6 + $0xa8] sm:$0xff]
    %v1121 = vld [vmem:[#allocation6 + $0xb0] sm:$0xff]
    %v1122 = vld [vmem:[#allocation6 + $0xb8] sm:$0xff]
    %v1123 = vld [vmem:[#allocation6 + $0xc0] sm:$0xff]
    %v1124 = vld [vmem:[#allocation6 + $0xc8] sm:$0xff]
    %v1125 = vld [vmem:[#allocation6 + $0xd0] sm:$0xff]
    %v1126 = vld [vmem:[#allocation6 + $0xd8] sm:$0xff]
    %v1127 = vld [vmem:[#allocation6 + $0xe0] sm:$0xff]
    %v1128 = vld [vmem:[#allocation6 + $0xe8] sm:$0xff]
    %v1129 = vld [vmem:[#allocation6 + $0xf0] sm:$0xff]
    %v1130 = vld [vmem:[#allocation6 + $0xf8] sm:$0xff]
    %v1131 = vld [vmem:[#allocation6 + $0x100] sm:$0xff]
    %v1132 = vld [vmem:[#allocation6 + $0x108] sm:$0xff]
    %v1133 = vld [vmem:[#allocation6 + $0x110] sm:$0xff]
    %v1134 = vld [vmem:[#allocation6 + $0x118] sm:$0xff]
    %v1135 = vld [vmem:[#allocation6 + $0x120] sm:$0xff]
    %v1136 = vld [vmem:[#allocation6 + $0x128] sm:$0xff]
    %v1137 = vld [vmem:[#allocation6 + $0x130] sm:$0xff]
    %v1138 = vld [vmem:[#allocation6 + $0x138] sm:$0xff]
    %v1139 = vld [vmem:[#allocation6 + $0x140] sm:$0xff]
    %v1140 = vld [vmem:[#allocation6 + $0x148] sm:$0xff]
    %v1141 = vld [vmem:[#allocation6 + $0x150] sm:$0xff]
    %v1142 = vld [vmem:[#allocation6 + $0x158] sm:$0xff]
    %v1143 = vld [vmem:[#allocation6 + $0x160] sm:$0xff]
    %v1144 = vld [vmem:[#allocation6 + $0x168] sm:$0xff]
    %v1145 = vld [vmem:[#allocation6 + $0x170] sm:$0xff]
    %v1146 = vld [vmem:[#allocation6 + $0x178] sm:$0xff]
    %v1147 = vld [vmem:[%s8] sm:$0x7]
    %v1149 = vlaneseq
    %v1150 = vshrl.u32 %v1149, 7
    %v1151 = vsub.s32 0, %v1150
    %v1152 = vrot.slane %v1147, %v1151
    %v1153 = vlaneseq
    %v1154 = vshrl.u32 %v1153, 7
    %v1155 = vsub.s32 1, %v1154
    %v1156 = vrot.slane %v1147, %v1155
    %v1157 = vlaneseq
    %v1158 = vshrl.u32 %v1157, 7
    %v1159 = vsub.s32 2, %v1158
    %v1160 = vrot.slane %v1147, %v1159
    %1164 = vmatprep.subr.mxu0 %v1145
    %1165 = vmatpush1.msra.mxu0 %v1144
    %1166 = vmatprep.subr.mxu0 %v1142
    %1167 = vmatpush1.msra.mxu0 %v1141
    %1168 = vmatprep.subr.mxu0 %v1139
    %1169 = vmatpush1.msra.mxu0 %v1138
    %1170 = vmatprep.subr.mxu0 %v1136
    %1171 = vmatpush1.msra.mxu0 %v1135
    %1172 = vmatprep.subr.mxu0 %v1133
    %1173 = vmatpush1.msra.mxu0 %v1132
    %1174 = vmatprep.subr.mxu0 %v1130
    %1175 = vmatpush1.msra.mxu0 %v1129
    %1176 = vmatprep.subr.mxu0 %v1127
    %1177 = vmatpush1.msra.mxu0 %v1126
    %1178 = vmatprep.subr.mxu0 %v1124
    %1179 = vmatpush1.msra.mxu0 %v1123
    %1180 = vmatprep.subr.mxu0 %v1121
    %1181 = vmatpush1.msra.mxu0 %v1120
    %1182 = vmatprep.subr.mxu0 %v1118
    %1183 = vmatpush1.msra.mxu0 %v1117
    %1184 = vmatprep.subr.mxu0 %v1115
    %1185 = vmatpush1.msra.mxu0 %v1114
    %1186 = vmatprep.subr.mxu0 %v1112
    %1187 = vmatpush1.msra.mxu0 %v1111
    %1188 = vmatprep.subr.mxu0 %v1109
    %1189 = vmatpush1.msra.mxu0 %v1108
    %1190 = vmatprep.subr.mxu0 %v1106
    %1191 = vmatpush1.msra.mxu0 %v1105
    %1192 = vmatprep.subr.mxu0 %v1103
    %1193 = vmatpush1.msra.mxu0 %v1102
    %1194 = vmatprep.subr.mxu0 %v1100
    %1195 = vmatpush1.msra.mxu0 %v1099
    %1196 = vmatprep.subr.mxu0 0.0
    %1197 = vmatpush2.msra.mxu0 0.0
    %1198 = vmatprep.subr.mxu0 0.0
    %1199 = vmatpush2.msra.mxu0 0.0
    %1200 = vmatprep.subr.mxu0 0.0
    %1201 = vmatpush2.msra.mxu0 0.0
    %1202 = vmatprep.subr.mxu0 0.0
    %1203 = vmatpush2.msra.mxu0 0.0
    %1204 = vmatprep.subr.mxu0 0.0
    %1205 = vmatpush2.msra.mxu0 0.0
    %1206 = vmatprep.subr.mxu0 0.0
    %1207 = vmatpush2.msra.mxu0 0.0
    %1208 = vmatprep.subr.mxu0 0.0
    %1209 = vmatpush2.msra.mxu0 0.0
    %1210 = vmatprep.subr.mxu0 0.0
    %1211 = vmatpush2.msra.mxu0 0.0
    %1212 = vmatprep.subr.mxu0 0.0
    %1213 = vmatpush2.msra.mxu0 0.0
    %1214 = vmatprep.subr.mxu0 0.0
    %1215 = vmatpush2.msra.mxu0 0.0
    %1216 = vmatprep.subr.mxu0 0.0
    %1217 = vmatpush2.msra.mxu0 0.0
    %1218 = vmatprep.subr.mxu0 0.0
    %1219 = vmatpush2.msra.mxu0 0.0
    %1220 = vmatprep.subr.mxu0 0.0
    %1221 = vmatpush2.msra.mxu0 0.0
    %1222 = vmatprep.subr.mxu0 0.0
    %1223 = vmatpush2.msra.mxu0 0.0
    %1224 = vmatprep.subr.mxu0 0.0
    %1225 = vmatpush2.msra.mxu0 0.0
    %1226 = vmatprep.subr.mxu0 0.0
    %1227 = vmatpush2.msra.mxu0 0.0
    %1228 = vmatprep.mubr.f32.mxu0 0.0
    %1229 = vmatmul.mubr.f32.gmra.mxu0 %v1098
    %v1230 = vpop.f32.mrf.mxu0
    %v1231 = vadd.f32 %v1152, %v1230
    %v1232 = vpop.f32.mrf.mxu0
    %v1233 = vadd.f32 %v1156, %v1232
    %1234 = vdwg.mxu0
    %1235 = vmatprep.subr.mxu0 0.0
    %1236 = vmatpush1.msra.mxu0 %v1146
    %1237 = vmatprep.subr.mxu0 0.0
    %1238 = vmatpush1.msra.mxu0 %v1143
    %1239 = vmatprep.subr.mxu0 0.0
    %1240 = vmatpush1.msra.mxu0 %v1140
    %1241 = vmatprep.subr.mxu0 0.0
    %1242 = vmatpush1.msra.mxu0 %v1137
    %1243 = vmatprep.subr.mxu0 0.0
    %1244 = vmatpush1.msra.mxu0 %v1134
    %1245 = vmatprep.subr.mxu0 0.0
    %1246 = vmatpush1.msra.mxu0 %v1131
    %1247 = vmatprep.subr.mxu0 0.0
    %1248 = vmatpush1.msra.mxu0 %v1128
    %1249 = vmatprep.subr.mxu0 0.0
    %1250 = vmatpush1.msra.mxu0 %v1125
    %1251 = vmatprep.subr.mxu0 0.0
    %1252 = vmatpush1.msra.mxu0 %v1122
    %1253 = vmatprep.subr.mxu0 0.0
    %1254 = vmatpush1.msra.mxu0 %v1119
    %1255 = vmatprep.subr.mxu0 0.0
    %1256 = vmatpush1.msra.mxu0 %v1116
    %1257 = vmatprep.subr.mxu0 0.0
    %1258 = vmatpush1.msra.mxu0 %v1113
    %1259 = vmatprep.subr.mxu0 0.0
    %1260 = vmatpush1.msra.mxu0 %v1110
    %1261 = vmatprep.subr.mxu0 0.0
    %1262 = vmatpush1.msra.mxu0 %v1107
    %1263 = vmatprep.subr.mxu0 0.0
    %1264 = vmatpush1.msra.mxu0 %v1104
    %1265 = vmatprep.subr.mxu0 0.0
    %1266 = vmatpush1.msra.mxu0 %v1101
    %1267 = vmatprep.subr.mxu0 0.0
    %1268 = vmatpush2.msra.mxu0 0.0
    %1269 = vmatprep.subr.mxu0 0.0
    %1270 = vmatpush2.msra.mxu0 0.0
    %1271 = vmatprep.subr.mxu0 0.0
    %1272 = vmatpush2.msra.mxu0 0.0
    %1273 = vmatprep.subr.mxu0 0.0
    %1274 = vmatpush2.msra.mxu0 0.0
    %1275 = vmatprep.subr.mxu0 0.0
    %1276 = vmatpush2.msra.mxu0 0.0
    %1277 = vmatprep.subr.mxu0 0.0
    %1278 = vmatpush2.msra.mxu0 0.0
    %1279 = vmatprep.subr.mxu0 0.0
    %1280 = vmatpush2.msra.mxu0 0.0
    %1281 = vmatprep.subr.mxu0 0.0
    %1282 = vmatpush2.msra.mxu0 0.0
    %1283 = vmatprep.subr.mxu0 0.0
    %1284 = vmatpush2.msra.mxu0 0.0
    %1285 = vmatprep.subr.mxu0 0.0
    %1286 = vmatpush2.msra.mxu0 0.0
    %1287 = vmatprep.subr.mxu0 0.0
    %1288 = vmatpush2.msra.mxu0 0.0
    %1289 = vmatprep.subr.mxu0 0.0
    %1290 = vmatpush2.msra.mxu0 0.0
    %1291 = vmatprep.subr.mxu0 0.0
    %1292 = vmatpush2.msra.mxu0 0.0
    %1293 = vmatprep.subr.mxu0 0.0
    %1294 = vmatpush2.msra.mxu0 0.0
    %1295 = vmatprep.subr.mxu0 0.0
    %1296 = vmatpush2.msra.mxu0 0.0
    %1297 = vmatprep.subr.mxu0 0.0
    %1298 = vmatpush2.msra.mxu0 0.0
    %1299 = vmatprep.mubr.f32.mxu0 0.0
    %1300 = vmatmul.mubr.f32.gmra.mxu0 %v1098
    %v1301 = vpop.f32.mrf.mxu0
    %v1302 = vadd.f32 %v1160, %v1301
    %v1303 = vpop.f32.mrf.mxu0
    %1304 = vdwg.mxu0
    %v1305 = vmax.f32 %v1231, 0.0
    %v1306 = vmax.f32 %v1233, 0.0
    %v1307 = vmax.f32 %v1302, 0.0
    %v1308 = vld [vmem:[#allocation7] sm:$0xff]
    %v1309 = vld [vmem:[#allocation7 + $0x8] sm:$0xff]
    %v1310 = vld [vmem:[#allocation7 + $0x10] sm:$0xff]
    %v1311 = vld [vmem:[#allocation7 + $0x18] sm:$0xff]
    %v1312 = vld [vmem:[#allocation7 + $0x20] sm:$0xff]
    %v1313 = vld [vmem:[#allocation7 + $0x28] sm:$0xff]
    %v1314 = vld [vmem:[#allocation7 + $0x30] sm:$0xff]
    %v1315 = vld [vmem:[#allocation7 + $0x38] sm:$0xff]
    %v1316 = vld [vmem:[#allocation7 + $0x40] sm:$0xff]
    %v1317 = vld [vmem:[#allocation7 + $0x48] sm:$0xff]
    %v1318 = vld [vmem:[#allocation7 + $0x50] sm:$0xff]
    %v1319 = vld [vmem:[#allocation7 + $0x58] sm:$0xff]
    %v1320 = vld [vmem:[#allocation7 + $0x60] sm:$0xff]
    %v1321 = vld [vmem:[#allocation7 + $0x68] sm:$0xff]
    %v1322 = vld [vmem:[#allocation7 + $0x70] sm:$0xff]
    %v1323 = vld [vmem:[#allocation7 + $0x78] sm:$0xff]
    %v1324 = vld [vmem:[#allocation7 + $0x80] sm:$0xff]
    %v1325 = vld [vmem:[#allocation7 + $0x88] sm:$0xff]
    %v1326 = vld [vmem:[#allocation7 + $0x90] sm:$0xff]
    %v1327 = vld [vmem:[#allocation7 + $0x98] sm:$0xff]
    %v1328 = vld [vmem:[#allocation7 + $0xa0] sm:$0xff]
    %v1329 = vld [vmem:[#allocation7 + $0xa8] sm:$0xff]
    %v1330 = vld [vmem:[#allocation7 + $0xb0] sm:$0xff]
    %v1331 = vld [vmem:[#allocation7 + $0xb8] sm:$0xff]
    %v1332 = vld [vmem:[#allocation7 + $0xc0] sm:$0xff]
    %v1333 = vld [vmem:[#allocation7 + $0xc8] sm:$0xff]
    %v1334 = vld [vmem:[#allocation7 + $0xd0] sm:$0xff]
    %v1335 = vld [vmem:[#allocation7 + $0xd8] sm:$0xff]
    %v1336 = vld [vmem:[#allocation7 + $0xe0] sm:$0xff]
    %v1337 = vld [vmem:[#allocation7 + $0xe8] sm:$0xff]
    %v1338 = vld [vmem:[#allocation7 + $0xf0] sm:$0xff]
    %v1339 = vld [vmem:[#allocation7 + $0xf8] sm:$0xff]
    %v1340 = vld [vmem:[#allocation7 + $0x100] sm:$0xff]
    %v1341 = vld [vmem:[#allocation7 + $0x108] sm:$0xff]
    %v1342 = vld [vmem:[#allocation7 + $0x110] sm:$0xff]
    %v1343 = vld [vmem:[#allocation7 + $0x118] sm:$0xff]
    %v1344 = vld [vmem:[#allocation7 + $0x120] sm:$0xff]
    %v1345 = vld [vmem:[#allocation7 + $0x128] sm:$0xff]
    %v1346 = vld [vmem:[#allocation7 + $0x130] sm:$0xff]
    %v1347 = vld [vmem:[#allocation7 + $0x138] sm:$0xff]
    %v1348 = vld [vmem:[#allocation7 + $0x140] sm:$0xff]
    %v1349 = vld [vmem:[#allocation7 + $0x148] sm:$0xff]
    %v1350 = vld [vmem:[#allocation7 + $0x150] sm:$0xff]
    %v1351 = vld [vmem:[#allocation7 + $0x158] sm:$0xff]
    %v1352 = vld [vmem:[#allocation7 + $0x160] sm:$0xff]
    %v1353 = vld [vmem:[#allocation7 + $0x168] sm:$0xff]
    %v1354 = vld [vmem:[#allocation7 + $0x170] sm:$0xff]
    %v1355 = vld [vmem:[#allocation7 + $0x178] sm:$0xff]
    %v1356 = vld [vmem:[#allocation7 + $0x180] sm:$0xff]
    %v1357 = vld [vmem:[#allocation7 + $0x188] sm:$0xff]
    %v1358 = vld [vmem:[#allocation7 + $0x190] sm:$0xff]
    %v1359 = vld [vmem:[#allocation7 + $0x198] sm:$0xff]
    %v1360 = vld [vmem:[#allocation7 + $0x1a0] sm:$0xff]
    %v1361 = vld [vmem:[#allocation7 + $0x1a8] sm:$0xff]
    %v1362 = vld [vmem:[#allocation7 + $0x1b0] sm:$0xff]
    %v1363 = vld [vmem:[#allocation7 + $0x1b8] sm:$0xff]
    %v1364 = vld [vmem:[#allocation7 + $0x1c0] sm:$0xff]
    %v1365 = vld [vmem:[#allocation7 + $0x1c8] sm:$0xff]
    %v1366 = vld [vmem:[#allocation7 + $0x1d0] sm:$0xff]
    %v1367 = vld [vmem:[#allocation7 + $0x1d8] sm:$0xff]
    %v1368 = vld [vmem:[#allocation7 + $0x1e0] sm:$0xff]
    %v1369 = vld [vmem:[#allocation7 + $0x1e8] sm:$0xff]
    %v1370 = vld [vmem:[#allocation7 + $0x1f0] sm:$0xff]
    %v1371 = vld [vmem:[#allocation7 + $0x1f8] sm:$0xff]
    %v1372 = vld [vmem:[#allocation7 + $0x200] sm:$0xff]
    %v1373 = vld [vmem:[#allocation7 + $0x208] sm:$0xff]
    %v1374 = vld [vmem:[#allocation7 + $0x210] sm:$0xff]
    %v1375 = vld [vmem:[#allocation7 + $0x218] sm:$0xff]
    %v1376 = vld [vmem:[#allocation7 + $0x220] sm:$0xff]
    %v1377 = vld [vmem:[#allocation7 + $0x228] sm:$0xff]
    %v1378 = vld [vmem:[#allocation7 + $0x230] sm:$0xff]
    %v1379 = vld [vmem:[#allocation7 + $0x238] sm:$0xff]
    %v1380 = vld [vmem:[#allocation7 + $0x240] sm:$0xff]
    %v1381 = vld [vmem:[#allocation7 + $0x248] sm:$0xff]
    %v1382 = vld [vmem:[#allocation7 + $0x250] sm:$0xff]
    %v1383 = vld [vmem:[#allocation7 + $0x258] sm:$0xff]
    %v1384 = vld [vmem:[#allocation7 + $0x260] sm:$0xff]
    %v1385 = vld [vmem:[#allocation7 + $0x268] sm:$0xff]
    %v1386 = vld [vmem:[#allocation7 + $0x270] sm:$0xff]
    %v1387 = vld [vmem:[#allocation7 + $0x278] sm:$0xff]
    %v1388 = vld [vmem:[#allocation7 + $0x280] sm:$0xff]
    %v1389 = vld [vmem:[#allocation7 + $0x288] sm:$0xff]
    %v1390 = vld [vmem:[#allocation7 + $0x290] sm:$0xff]
    %v1391 = vld [vmem:[#allocation7 + $0x298] sm:$0xff]
    %v1392 = vld [vmem:[#allocation7 + $0x2a0] sm:$0xff]
    %v1393 = vld [vmem:[#allocation7 + $0x2a8] sm:$0xff]
    %v1394 = vld [vmem:[#allocation7 + $0x2b0] sm:$0xff]
    %v1395 = vld [vmem:[#allocation7 + $0x2b8] sm:$0xff]
    %v1396 = vld [vmem:[#allocation7 + $0x2c0] sm:$0xff]
    %v1397 = vld [vmem:[#allocation7 + $0x2c8] sm:$0xff]
    %v1398 = vld [vmem:[#allocation7 + $0x2d0] sm:$0xff]
    %v1399 = vld [vmem:[#allocation7 + $0x2d8] sm:$0xff]
    %v1400 = vld [vmem:[#allocation7 + $0x2e0] sm:$0xff]
    %v1401 = vld [vmem:[#allocation7 + $0x2e8] sm:$0xff]
    %v1402 = vld [vmem:[#allocation7 + $0x2f0] sm:$0xff]
    %v1403 = vld [vmem:[#allocation7 + $0x2f8] sm:$0xff]
    %v1404 = vld [vmem:[#allocation7 + $0x300] sm:$0xff]
    %v1405 = vld [vmem:[#allocation7 + $0x308] sm:$0xff]
    %v1406 = vld [vmem:[#allocation7 + $0x310] sm:$0xff]
    %v1407 = vld [vmem:[#allocation7 + $0x318] sm:$0xff]
    %v1408 = vld [vmem:[#allocation7 + $0x320] sm:$0xff]
    %v1409 = vld [vmem:[#allocation7 + $0x328] sm:$0xff]
    %v1410 = vld [vmem:[#allocation7 + $0x330] sm:$0xff]
    %v1411 = vld [vmem:[#allocation7 + $0x338] sm:$0xff]
    %v1412 = vld [vmem:[#allocation7 + $0x340] sm:$0xff]
    %v1413 = vld [vmem:[#allocation7 + $0x348] sm:$0xff]
    %v1414 = vld [vmem:[#allocation7 + $0x350] sm:$0xff]
    %v1415 = vld [vmem:[#allocation7 + $0x358] sm:$0xff]
    %v1416 = vld [vmem:[#allocation7 + $0x360] sm:$0xff]
    %v1417 = vld [vmem:[#allocation7 + $0x368] sm:$0xff]
    %v1418 = vld [vmem:[#allocation7 + $0x370] sm:$0xff]
    %v1419 = vld [vmem:[#allocation7 + $0x378] sm:$0xff]
    %v1420 = vld [vmem:[#allocation7 + $0x380] sm:$0xff]
    %v1421 = vld [vmem:[#allocation7 + $0x388] sm:$0xff]
    %v1422 = vld [vmem:[#allocation7 + $0x390] sm:$0xff]
    %v1423 = vld [vmem:[#allocation7 + $0x398] sm:$0xff]
    %v1424 = vld [vmem:[#allocation7 + $0x3a0] sm:$0xff]
    %v1425 = vld [vmem:[#allocation7 + $0x3a8] sm:$0xff]
    %v1426 = vld [vmem:[#allocation7 + $0x3b0] sm:$0xff]
    %v1427 = vld [vmem:[#allocation7 + $0x3b8] sm:$0xff]
    %v1428 = vld [vmem:[#allocation7 + $0x3c0] sm:$0xff]
    %v1429 = vld [vmem:[#allocation7 + $0x3c8] sm:$0xff]
    %v1430 = vld [vmem:[#allocation7 + $0x3d0] sm:$0xff]
    %v1431 = vld [vmem:[#allocation7 + $0x3d8] sm:$0xff]
    %v1432 = vld [vmem:[#allocation7 + $0x3e0] sm:$0xff]
    %v1433 = vld [vmem:[#allocation7 + $0x3e8] sm:$0xff]
    %v1434 = vld [vmem:[#allocation7 + $0x3f0] sm:$0xff]
    %v1435 = vld [vmem:[#allocation7 + $0x3f8] sm:$0xff]
    %v1436 = vld [vmem:[#allocation7 + $0x400] sm:$0xff]
    %v1437 = vld [vmem:[#allocation7 + $0x408] sm:$0xff]
    %v1438 = vld [vmem:[#allocation7 + $0x410] sm:$0xff]
    %v1439 = vld [vmem:[#allocation7 + $0x418] sm:$0xff]
    %v1440 = vld [vmem:[#allocation7 + $0x420] sm:$0xff]
    %v1441 = vld [vmem:[#allocation7 + $0x428] sm:$0xff]
    %v1442 = vld [vmem:[#allocation7 + $0x430] sm:$0xff]
    %v1443 = vld [vmem:[#allocation7 + $0x438] sm:$0xff]
    %v1444 = vld [vmem:[#allocation7 + $0x440] sm:$0xff]
    %v1445 = vld [vmem:[#allocation7 + $0x448] sm:$0xff]
    %v1446 = vld [vmem:[#allocation7 + $0x450] sm:$0xff]
    %v1447 = vld [vmem:[#allocation7 + $0x458] sm:$0xff]
    %v1448 = vld [vmem:[#allocation7 + $0x460] sm:$0xff]
    %v1449 = vld [vmem:[#allocation7 + $0x468] sm:$0xff]
    %v1450 = vld [vmem:[#allocation7 + $0x470] sm:$0xff]
    %v1451 = vld [vmem:[#allocation7 + $0x478] sm:$0xff]
    %v1452 = vld [vmem:[#allocation7 + $0x480] sm:$0xff]
    %v1453 = vld [vmem:[#allocation7 + $0x488] sm:$0xff]
    %v1454 = vld [vmem:[#allocation7 + $0x490] sm:$0xff]
    %v1455 = vld [vmem:[#allocation7 + $0x498] sm:$0xff]
    %v1456 = vld [vmem:[#allocation7 + $0x4a0] sm:$0xff]
    %v1457 = vld [vmem:[#allocation7 + $0x4a8] sm:$0xff]
    %v1458 = vld [vmem:[#allocation7 + $0x4b0] sm:$0xff]
    %v1459 = vld [vmem:[#allocation7 + $0x4b8] sm:$0xff]
    %v1460 = vld [vmem:[#allocation7 + $0x4c0] sm:$0xff]
    %v1461 = vld [vmem:[#allocation7 + $0x4c8] sm:$0xff]
    %v1462 = vld [vmem:[#allocation7 + $0x4d0] sm:$0xff]
    %v1463 = vld [vmem:[#allocation7 + $0x4d8] sm:$0xff]
    %v1464 = vld [vmem:[#allocation7 + $0x4e0] sm:$0xff]
    %v1465 = vld [vmem:[#allocation7 + $0x4e8] sm:$0xff]
    %v1466 = vld [vmem:[#allocation7 + $0x4f0] sm:$0xff]
    %v1467 = vld [vmem:[#allocation7 + $0x4f8] sm:$0xff]
    %v1468 = vld [vmem:[#allocation7 + $0x500] sm:$0xff]
    %v1469 = vld [vmem:[#allocation7 + $0x508] sm:$0xff]
    %v1470 = vld [vmem:[#allocation7 + $0x510] sm:$0xff]
    %v1471 = vld [vmem:[#allocation7 + $0x518] sm:$0xff]
    %v1472 = vld [vmem:[#allocation7 + $0x520] sm:$0xff]
    %v1473 = vld [vmem:[#allocation7 + $0x528] sm:$0xff]
    %v1474 = vld [vmem:[#allocation7 + $0x530] sm:$0xff]
    %v1475 = vld [vmem:[#allocation7 + $0x538] sm:$0xff]
    %v1476 = vld [vmem:[#allocation7 + $0x540] sm:$0xff]
    %v1477 = vld [vmem:[#allocation7 + $0x548] sm:$0xff]
    %v1478 = vld [vmem:[#allocation7 + $0x550] sm:$0xff]
    %v1479 = vld [vmem:[#allocation7 + $0x558] sm:$0xff]
    %v1480 = vld [vmem:[#allocation7 + $0x560] sm:$0xff]
    %v1481 = vld [vmem:[#allocation7 + $0x568] sm:$0xff]
    %v1482 = vld [vmem:[#allocation7 + $0x570] sm:$0xff]
    %v1483 = vld [vmem:[#allocation7 + $0x578] sm:$0xff]
    %v1484 = vld [vmem:[#allocation7 + $0x580] sm:$0xff]
    %v1485 = vld [vmem:[#allocation7 + $0x588] sm:$0xff]
    %v1486 = vld [vmem:[#allocation7 + $0x590] sm:$0xff]
    %v1487 = vld [vmem:[#allocation7 + $0x598] sm:$0xff]
    %v1488 = vld [vmem:[#allocation7 + $0x5a0] sm:$0xff]
    %v1489 = vld [vmem:[#allocation7 + $0x5a8] sm:$0xff]
    %v1490 = vld [vmem:[#allocation7 + $0x5b0] sm:$0xff]
    %v1491 = vld [vmem:[#allocation7 + $0x5b8] sm:$0xff]
    %v1492 = vld [vmem:[#allocation7 + $0x5c0] sm:$0xff]
    %v1493 = vld [vmem:[#allocation7 + $0x5c8] sm:$0xff]
    %v1494 = vld [vmem:[#allocation7 + $0x5d0] sm:$0xff]
    %v1495 = vld [vmem:[#allocation7 + $0x5d8] sm:$0xff]
    %v1496 = vld [vmem:[#allocation7 + $0x5e0] sm:$0xff]
    %v1497 = vld [vmem:[#allocation7 + $0x5e8] sm:$0xff]
    %v1498 = vld [vmem:[#allocation7 + $0x5f0] sm:$0xff]
    %v1499 = vld [vmem:[#allocation7 + $0x5f8] sm:$0xff]
    %v1500 = vld [vmem:[#allocation7 + $0x600] sm:$0xff]
    %v1501 = vld [vmem:[#allocation7 + $0x608] sm:$0xff]
    %v1502 = vld [vmem:[#allocation7 + $0x610] sm:$0xff]
    %v1503 = vld [vmem:[#allocation7 + $0x618] sm:$0xff]
    %v1504 = vld [vmem:[#allocation7 + $0x620] sm:$0xff]
    %v1505 = vld [vmem:[#allocation7 + $0x628] sm:$0xff]
    %v1506 = vld [vmem:[#allocation7 + $0x630] sm:$0xff]
    %v1507 = vld [vmem:[#allocation7 + $0x638] sm:$0xff]
    %v1508 = vld [vmem:[#allocation7 + $0x640] sm:$0xff]
    %v1509 = vld [vmem:[#allocation7 + $0x648] sm:$0xff]
    %v1510 = vld [vmem:[#allocation7 + $0x650] sm:$0xff]
    %v1511 = vld [vmem:[#allocation7 + $0x658] sm:$0xff]
    %v1512 = vld [vmem:[#allocation7 + $0x660] sm:$0xff]
    %v1513 = vld [vmem:[#allocation7 + $0x668] sm:$0xff]
    %v1514 = vld [vmem:[#allocation7 + $0x670] sm:$0xff]
    %v1515 = vld [vmem:[#allocation7 + $0x678] sm:$0xff]
    %v1516 = vld [vmem:[#allocation7 + $0x680] sm:$0xff]
    %v1517 = vld [vmem:[#allocation7 + $0x688] sm:$0xff]
    %v1518 = vld [vmem:[#allocation7 + $0x690] sm:$0xff]
    %v1519 = vld [vmem:[#allocation7 + $0x698] sm:$0xff]
    %v1520 = vld [vmem:[#allocation7 + $0x6a0] sm:$0xff]
    %v1521 = vld [vmem:[#allocation7 + $0x6a8] sm:$0xff]
    %v1522 = vld [vmem:[#allocation7 + $0x6b0] sm:$0xff]
    %v1523 = vld [vmem:[#allocation7 + $0x6b8] sm:$0xff]
    %v1524 = vld [vmem:[#allocation7 + $0x6c0] sm:$0xff]
    %v1525 = vld [vmem:[#allocation7 + $0x6c8] sm:$0xff]
    %v1526 = vld [vmem:[#allocation7 + $0x6d0] sm:$0xff]
    %v1527 = vld [vmem:[#allocation7 + $0x6d8] sm:$0xff]
    %v1528 = vld [vmem:[#allocation7 + $0x6e0] sm:$0xff]
    %v1529 = vld [vmem:[#allocation7 + $0x6e8] sm:$0xff]
    %v1530 = vld [vmem:[#allocation7 + $0x6f0] sm:$0xff]
    %v1531 = vld [vmem:[#allocation7 + $0x6f8] sm:$0xff]
    %v1532 = vld [vmem:[#allocation7 + $0x700] sm:$0xff]
    %v1533 = vld [vmem:[#allocation7 + $0x708] sm:$0xff]
    %v1534 = vld [vmem:[#allocation7 + $0x710] sm:$0xff]
    %v1535 = vld [vmem:[#allocation7 + $0x718] sm:$0xff]
    %v1536 = vld [vmem:[#allocation7 + $0x720] sm:$0xff]
    %v1537 = vld [vmem:[#allocation7 + $0x728] sm:$0xff]
    %v1538 = vld [vmem:[#allocation7 + $0x730] sm:$0xff]
    %v1539 = vld [vmem:[#allocation7 + $0x738] sm:$0xff]
    %v1540 = vld [vmem:[#allocation7 + $0x740] sm:$0xff]
    %v1541 = vld [vmem:[#allocation7 + $0x748] sm:$0xff]
    %v1542 = vld [vmem:[#allocation7 + $0x750] sm:$0xff]
    %v1543 = vld [vmem:[#allocation7 + $0x758] sm:$0xff]
    %v1544 = vld [vmem:[#allocation7 + $0x760] sm:$0xff]
    %v1545 = vld [vmem:[#allocation7 + $0x768] sm:$0xff]
    %v1546 = vld [vmem:[#allocation7 + $0x770] sm:$0xff]
    %v1547 = vld [vmem:[#allocation7 + $0x778] sm:$0xff]
    %v1548 = vld [vmem:[%s10] sm:$0x1f]
    %v1550 = vlaneseq
    %v1551 = vshrl.u32 %v1550, 7
    %v1552 = vsub.s32 0, %v1551
    %v1553 = vrot.slane %v1548, %v1552
    %v1554 = vlaneseq
    %v1555 = vshrl.u32 %v1554, 7
    %v1556 = vsub.s32 1, %v1555
    %v1557 = vrot.slane %v1548, %v1556
    %v1558 = vlaneseq
    %v1559 = vshrl.u32 %v1558, 7
    %v1560 = vsub.s32 2, %v1559
    %v1561 = vrot.slane %v1548, %v1560
    %v1562 = vlaneseq
    %v1563 = vshrl.u32 %v1562, 7
    %v1564 = vsub.s32 3, %v1563
    %v1565 = vrot.slane %v1548, %v1564
    %v1566 = vlaneseq
    %v1567 = vshrl.u32 %v1566, 7
    %v1568 = vsub.s32 4, %v1567
    %v1569 = vrot.slane %v1548, %v1568
    %1575 = vmatprep.subr.mxu0 %v1384
    %1576 = vmatpush1.msra.mxu0 %v1383
    %1577 = vmatprep.subr.mxu0 %v1379
    %1578 = vmatpush1.msra.mxu0 %v1378
    %1579 = vmatprep.subr.mxu0 %v1374
    %1580 = vmatpush1.msra.mxu0 %v1373
    %1581 = vmatprep.subr.mxu0 %v1369
    %1582 = vmatpush1.msra.mxu0 %v1368
    %1583 = vmatprep.subr.mxu0 %v1364
    %1584 = vmatpush1.msra.mxu0 %v1363
    %1585 = vmatprep.subr.mxu0 %v1359
    %1586 = vmatpush1.msra.mxu0 %v1358
    %1587 = vmatprep.subr.mxu0 %v1354
    %1588 = vmatpush1.msra.mxu0 %v1353
    %1589 = vmatprep.subr.mxu0 %v1349
    %1590 = vmatpush1.msra.mxu0 %v1348
    %1591 = vmatprep.subr.mxu0 %v1344
    %1592 = vmatpush1.msra.mxu0 %v1343
    %1593 = vmatprep.subr.mxu0 %v1339
    %1594 = vmatpush1.msra.mxu0 %v1338
    %1595 = vmatprep.subr.mxu0 %v1334
    %1596 = vmatpush1.msra.mxu0 %v1333
    %1597 = vmatprep.subr.mxu0 %v1329
    %1598 = vmatpush1.msra.mxu0 %v1328
    %1599 = vmatprep.subr.mxu0 %v1324
    %1600 = vmatpush1.msra.mxu0 %v1323
    %1601 = vmatprep.subr.mxu0 %v1319
    %1602 = vmatpush1.msra.mxu0 %v1318
    %1603 = vmatprep.subr.mxu0 %v1314
    %1604 = vmatpush1.msra.mxu0 %v1313
    %1605 = vmatprep.subr.mxu0 %v1309
    %1606 = vmatpush1.msra.mxu0 %v1308
    %1607 = vmatprep.subr.mxu0 %v1464
    %1608 = vmatpush2.msra.mxu0 %v1463
    %1609 = vmatprep.subr.mxu0 %v1459
    %1610 = vmatpush2.msra.mxu0 %v1458
    %1611 = vmatprep.subr.mxu0 %v1454
    %1612 = vmatpush2.msra.mxu0 %v1453
    %1613 = vmatprep.subr.mxu0 %v1449
    %1614 = vmatpush2.msra.mxu0 %v1448
    %1615 = vmatprep.subr.mxu0 %v1444
    %1616 = vmatpush2.msra.mxu0 %v1443
    %1617 = vmatprep.subr.mxu0 %v1439
    %1618 = vmatpush2.msra.mxu0 %v1438
    %1619 = vmatprep.subr.mxu0 %v1434
    %1620 = vmatpush2.msra.mxu0 %v1433
    %1621 = vmatprep.subr.mxu0 %v1429
    %1622 = vmatpush2.msra.mxu0 %v1428
    %1623 = vmatprep.subr.mxu0 %v1424
    %1624 = vmatpush2.msra.mxu0 %v1423
    %1625 = vmatprep.subr.mxu0 %v1419
    %1626 = vmatpush2.msra.mxu0 %v1418
    %1627 = vmatprep.subr.mxu0 %v1414
    %1628 = vmatpush2.msra.mxu0 %v1413
    %1629 = vmatprep.subr.mxu0 %v1409
    %1630 = vmatpush2.msra.mxu0 %v1408
    %1631 = vmatprep.subr.mxu0 %v1404
    %1632 = vmatpush2.msra.mxu0 %v1403
    %1633 = vmatprep.subr.mxu0 %v1399
    %1634 = vmatpush2.msra.mxu0 %v1398
    %1635 = vmatprep.subr.mxu0 %v1394
    %1636 = vmatpush2.msra.mxu0 %v1393
    %1637 = vmatprep.subr.mxu0 %v1389
    %1638 = vmatpush2.msra.mxu0 %v1388
    %1639 = vmatprep.mubr.f32.mxu0 %v1306
    %1640 = vmatmul.mubr.f32.gmra.mxu0 %v1305
    %v1641 = vpop.f32.mrf.mxu0
    %v1642 = vadd.f32 %v1553, %v1641
    %v1643 = vpop.f32.mrf.mxu0
    %v1644 = vadd.f32 %v1557, %v1643
    %1645 = vdwg.mxu0
    %1646 = vmatprep.subr.mxu0 %v1544
    %1647 = vmatpush1.msra.mxu0 %v1543
    %1648 = vmatprep.subr.mxu0 %v1539
    %1649 = vmatpush1.msra.mxu0 %v1538
    %1650 = vmatprep.subr.mxu0 %v1534
    %1651 = vmatpush1.msra.mxu0 %v1533
    %1652 = vmatprep.subr.mxu0 %v1529
    %1653 = vmatpush1.msra.mxu0 %v1528
    %1654 = vmatprep.subr.mxu0 %v1524
    %1655 = vmatpush1.msra.mxu0 %v1523
    %1656 = vmatprep.subr.mxu0 %v1519
    %1657 = vmatpush1.msra.mxu0 %v1518
    %1658 = vmatprep.subr.mxu0 %v1514
    %1659 = vmatpush1.msra.mxu0 %v1513
    %1660 = vmatprep.subr.mxu0 %v1509
    %1661 = vmatpush1.msra.mxu0 %v1508
    %1662 = vmatprep.subr.mxu0 %v1504
    %1663 = vmatpush1.msra.mxu0 %v1503
    %1664 = vmatprep.subr.mxu0 %v1499
    %1665 = vmatpush1.msra.mxu0 %v1498
    %1666 = vmatprep.subr.mxu0 %v1494
    %1667 = vmatpush1.msra.mxu0 %v1493
    %1668 = vmatprep.subr.mxu0 %v1489
    %1669 = vmatpush1.msra.mxu0 %v1488
    %1670 = vmatprep.subr.mxu0 %v1484
    %1671 = vmatpush1.msra.mxu0 %v1483
    %1672 = vmatprep.subr.mxu0 %v1479
    %1673 = vmatpush1.msra.mxu0 %v1478
    %1674 = vmatprep.subr.mxu0 %v1474
    %1675 = vmatpush1.msra.mxu0 %v1473
    %1676 = vmatprep.subr.mxu0 %v1469
    %1677 = vmatpush1.msra.mxu0 %v1468
    %1678 = vmatprep.subr.mxu0 0.0
    %1679 = vmatpush2.msra.mxu0 0.0
    %1680 = vmatprep.subr.mxu0 0.0
    %1681 = vmatpush2.msra.mxu0 0.0
    %1682 = vmatprep.subr.mxu0 0.0
    %1683 = vmatpush2.msra.mxu0 0.0
    %1684 = vmatprep.subr.mxu0 0.0
    %1685 = vmatpush2.msra.mxu0 0.0
    %1686 = vmatprep.subr.mxu0 0.0
    %1687 = vmatpush2.msra.mxu0 0.0
    %1688 = vmatprep.subr.mxu0 0.0
    %1689 = vmatpush2.msra.mxu0 0.0
    %1690 = vmatprep.subr.mxu0 0.0
    %1691 = vmatpush2.msra.mxu0 0.0
    %1692 = vmatprep.subr.mxu0 0.0
    %1693 = vmatpush2.msra.mxu0 0.0
    %1694 = vmatprep.subr.mxu0 0.0
    %1695 = vmatpush2.msra.mxu0 0.0
    %1696 = vmatprep.subr.mxu0 0.0
    %1697 = vmatpush2.msra.mxu0 0.0
    %1698 = vmatprep.subr.mxu0 0.0
    %1699 = vmatpush2.msra.mxu0 0.0
    %1700 = vmatprep.subr.mxu0 0.0
    %1701 = vmatpush2.msra.mxu0 0.0
    %1702 = vmatprep.subr.mxu0 0.0
    %1703 = vmatpush2.msra.mxu0 0.0
    %1704 = vmatprep.subr.mxu0 0.0
    %1705 = vmatpush2.msra.mxu0 0.0
    %1706 = vmatprep.subr.mxu0 0.0
    %1707 = vmatpush2.msra.mxu0 0.0
    %1708 = vmatprep.subr.mxu0 0.0
    %1709 = vmatpush2.msra.mxu0 0.0
    %1710 = vmatprep.mubr.f32.mxu0 0.0
    %1711 = vmatmul.mubr.f32.gmra.mxu0 %v1307
    %v1712 = vpop.f32.mrf.mxu0
    %v1713 = vadd.f32 %v1642, %v1712
    %v1714 = vpop.f32.mrf.mxu0
    %v1715 = vadd.f32 %v1644, %v1714
    %1716 = vdwg.mxu0
    %1717 = vmatprep.subr.mxu0 %v1386
    %1718 = vmatpush1.msra.mxu0 %v1385
    %1719 = vmatprep.subr.mxu0 %v1381
    %1720 = vmatpush1.msra.mxu0 %v1380
    %1721 = vmatprep.subr.mxu0 %v1376
    %1722 = vmatpush1.msra.mxu0 %v1375
    %1723 = vmatprep.subr.mxu0 %v1371
    %1724 = vmatpush1.msra.mxu0 %v1370
    %1725 = vmatprep.subr.mxu0 %v1366
    %1726 = vmatpush1.msra.mxu0 %v1365
    %1727 = vmatprep.subr.mxu0 %v1361
    %1728 = vmatpush1.msra.mxu0 %v1360
    %1729 = vmatprep.subr.mxu0 %v1356
    %1730 = vmatpush1.msra.mxu0 %v1355
    %1731 = vmatprep.subr.mxu0 %v1351
    %1732 = vmatpush1.msra.mxu0 %v1350
    %1733 = vmatprep.subr.mxu0 %v1346
    %1734 = vmatpush1.msra.mxu0 %v1345
    %1735 = vmatprep.subr.mxu0 %v1341
    %1736 = vmatpush1.msra.mxu0 %v1340
    %1737 = vmatprep.subr.mxu0 %v1336
    %1738 = vmatpush1.msra.mxu0 %v1335
    %1739 = vmatprep.subr.mxu0 %v1331
    %1740 = vmatpush1.msra.mxu0 %v1330
    %1741 = vmatprep.subr.mxu0 %v1326
    %1742 = vmatpush1.msra.mxu0 %v1325
    %1743 = vmatprep.subr.mxu0 %v1321
    %1744 = vmatpush1.msra.mxu0 %v1320
    %1745 = vmatprep.subr.mxu0 %v1316
    %1746 = vmatpush1.msra.mxu0 %v1315
    %1747 = vmatprep.subr.mxu0 %v1311
    %1748 = vmatpush1.msra.mxu0 %v1310
    %1749 = vmatprep.subr.mxu0 %v1466
    %1750 = vmatpush2.msra.mxu0 %v1465
    %1751 = vmatprep.subr.mxu0 %v1461
    %1752 = vmatpush2.msra.mxu0 %v1460
    %1753 = vmatprep.subr.mxu0 %v1456
    %1754 = vmatpush2.msra.mxu0 %v1455
    %1755 = vmatprep.subr.mxu0 %v1451
    %1756 = vmatpush2.msra.mxu0 %v1450
    %1757 = vmatprep.subr.mxu0 %v1446
    %1758 = vmatpush2.msra.mxu0 %v1445
    %1759 = vmatprep.subr.mxu0 %v1441
    %1760 = vmatpush2.msra.mxu0 %v1440
    %1761 = vmatprep.subr.mxu0 %v1436
    %1762 = vmatpush2.msra.mxu0 %v1435
    %1763 = vmatprep.subr.mxu0 %v1431
    %1764 = vmatpush2.msra.mxu0 %v1430
    %1765 = vmatprep.subr.mxu0 %v1426
    %1766 = vmatpush2.msra.mxu0 %v1425
    %1767 = vmatprep.subr.mxu0 %v1421
    %1768 = vmatpush2.msra.mxu0 %v1420
    %1769 = vmatprep.subr.mxu0 %v1416
    %1770 = vmatpush2.msra.mxu0 %v1415
    %1771 = vmatprep.subr.mxu0 %v1411
    %1772 = vmatpush2.msra.mxu0 %v1410
    %1773 = vmatprep.subr.mxu0 %v1406
    %1774 = vmatpush2.msra.mxu0 %v1405
    %1775 = vmatprep.subr.mxu0 %v1401
    %1776 = vmatpush2.msra.mxu0 %v1400
    %1777 = vmatprep.subr.mxu0 %v1396
    %1778 = vmatpush2.msra.mxu0 %v1395
    %1779 = vmatprep.subr.mxu0 %v1391
    %1780 = vmatpush2.msra.mxu0 %v1390
    %1781 = vmatprep.mubr.f32.mxu0 %v1306
    %1782 = vmatmul.mubr.f32.gmra.mxu0 %v1305
    %v1783 = vpop.f32.mrf.mxu0
    %v1784 = vadd.f32 %v1561, %v1783
    %v1785 = vpop.f32.mrf.mxu0
    %v1786 = vadd.f32 %v1565, %v1785
    %1787 = vdwg.mxu0
    %1788 = vmatprep.subr.mxu0 %v1546
    %1789 = vmatpush1.msra.mxu0 %v1545
    %1790 = vmatprep.subr.mxu0 %v1541
    %1791 = vmatpush1.msra.mxu0 %v1540
    %1792 = vmatprep.subr.mxu0 %v1536
    %1793 = vmatpush1.msra.mxu0 %v1535
    %1794 = vmatprep.subr.mxu0 %v1531
    %1795 = vmatpush1.msra.mxu0 %v1530
    %1796 = vmatprep.subr.mxu0 %v1526
    %1797 = vmatpush1.msra.mxu0 %v1525
    %1798 = vmatprep.subr.mxu0 %v1521
    %1799 = vmatpush1.msra.mxu0 %v1520
    %1800 = vmatprep.subr.mxu0 %v1516
    %1801 = vmatpush1.msra.mxu0 %v1515
    %1802 = vmatprep.subr.mxu0 %v1511
    %1803 = vmatpush1.msra.mxu0 %v1510
    %1804 = vmatprep.subr.mxu0 %v1506
    %1805 = vmatpush1.msra.mxu0 %v1505
    %1806 = vmatprep.subr.mxu0 %v1501
    %1807 = vmatpush1.msra.mxu0 %v1500
    %1808 = vmatprep.subr.mxu0 %v1496
    %1809 = vmatpush1.msra.mxu0 %v1495
    %1810 = vmatprep.subr.mxu0 %v1491
    %1811 = vmatpush1.msra.mxu0 %v1490
    %1812 = vmatprep.subr.mxu0 %v1486
    %1813 = vmatpush1.msra.mxu0 %v1485
    %1814 = vmatprep.subr.mxu0 %v1481
    %1815 = vmatpush1.msra.mxu0 %v1480
    %1816 = vmatprep.subr.mxu0 %v1476
    %1817 = vmatpush1.msra.mxu0 %v1475
    %1818 = vmatprep.subr.mxu0 %v1471
    %1819 = vmatpush1.msra.mxu0 %v1470
    %1820 = vmatprep.subr.mxu0 0.0
    %1821 = vmatpush2.msra.mxu0 0.0
    %1822 = vmatprep.subr.mxu0 0.0
    %1823 = vmatpush2.msra.mxu0 0.0
    %1824 = vmatprep.subr.mxu0 0.0
    %1825 = vmatpush2.msra.mxu0 0.0
    %1826 = vmatprep.subr.mxu0 0.0
    %1827 = vmatpush2.msra.mxu0 0.0
    %1828 = vmatprep.subr.mxu0 0.0
    %1829 = vmatpush2.msra.mxu0 0.0
    %1830 = vmatprep.subr.mxu0 0.0
    %1831 = vmatpush2.msra.mxu0 0.0
    %1832 = vmatprep.subr.mxu0 0.0
    %1833 = vmatpush2.msra.mxu0 0.0
    %1834 = vmatprep.subr.mxu0 0.0
    %1835 = vmatpush2.msra.mxu0 0.0
    %1836 = vmatprep.subr.mxu0 0.0
    %1837 = vmatpush2.msra.mxu0 0.0
    %1838 = vmatprep.subr.mxu0 0.0
    %1839 = vmatpush2.msra.mxu0 0.0
    %1840 = vmatprep.subr.mxu0 0.0
    %1841 = vmatpush2.msra.mxu0 0.0
    %1842 = vmatprep.subr.mxu0 0.0
    %1843 = vmatpush2.msra.mxu0 0.0
    %1844 = vmatprep.subr.mxu0 0.0
    %1845 = vmatpush2.msra.mxu0 0.0
    %1846 = vmatprep.subr.mxu0 0.0
    %1847 = vmatpush2.msra.mxu0 0.0
    %1848 = vmatprep.subr.mxu0 0.0
    %1849 = vmatpush2.msra.mxu0 0.0
    %1850 = vmatprep.subr.mxu0 0.0
    %1851 = vmatpush2.msra.mxu0 0.0
    %1852 = vmatprep.mubr.f32.mxu0 0.0
    %1853 = vmatmul.mubr.f32.gmra.mxu0 %v1307
    %v1854 = vpop.f32.mrf.mxu0
    %v1855 = vadd.f32 %v1784, %v1854
    %v1856 = vpop.f32.mrf.mxu0
    %v1857 = vadd.f32 %v1786, %v1856
    %1858 = vdwg.mxu0
    %1859 = vmatprep.subr.mxu0 0.0
    %1860 = vmatpush1.msra.mxu0 %v1387
    %1861 = vmatprep.subr.mxu0 0.0
    %1862 = vmatpush1.msra.mxu0 %v1382
    %1863 = vmatprep.subr.mxu0 0.0
    %1864 = vmatpush1.msra.mxu0 %v1377
    %1865 = vmatprep.subr.mxu0 0.0
    %1866 = vmatpush1.msra.mxu0 %v1372
    %1867 = vmatprep.subr.mxu0 0.0
    %1868 = vmatpush1.msra.mxu0 %v1367
    %1869 = vmatprep.subr.mxu0 0.0
    %1870 = vmatpush1.msra.mxu0 %v1362
    %1871 = vmatprep.subr.mxu0 0.0
    %1872 = vmatpush1.msra.mxu0 %v1357
    %1873 = vmatprep.subr.mxu0 0.0
    %1874 = vmatpush1.msra.mxu0 %v1352
    %1875 = vmatprep.subr.mxu0 0.0
    %1876 = vmatpush1.msra.mxu0 %v1347
    %1877 = vmatprep.subr.mxu0 0.0
    %1878 = vmatpush1.msra.mxu0 %v1342
    %1879 = vmatprep.subr.mxu0 0.0
    %1880 = vmatpush1.msra.mxu0 %v1337
    %1881 = vmatprep.subr.mxu0 0.0
    %1882 = vmatpush1.msra.mxu0 %v1332
    %1883 = vmatprep.subr.mxu0 0.0
    %1884 = vmatpush1.msra.mxu0 %v1327
    %1885 = vmatprep.subr.mxu0 0.0
    %1886 = vmatpush1.msra.mxu0 %v1322
    %1887 = vmatprep.subr.mxu0 0.0
    %1888 = vmatpush1.msra.mxu0 %v1317
    %1889 = vmatprep.subr.mxu0 0.0
    %1890 = vmatpush1.msra.mxu0 %v1312
    %1891 = vmatprep.subr.mxu0 0.0
    %1892 = vmatpush2.msra.mxu0 %v1467
    %1893 = vmatprep.subr.mxu0 0.0
    %1894 = vmatpush2.msra.mxu0 %v1462
    %1895 = vmatprep.subr.mxu0 0.0
    %1896 = vmatpush2.msra.mxu0 %v1457
    %1897 = vmatprep.subr.mxu0 0.0
    %1898 = vmatpush2.msra.mxu0 %v1452
    %1899 = vmatprep.subr.mxu0 0.0
    %1900 = vmatpush2.msra.mxu0 %v1447
    %1901 = vmatprep.subr.mxu0 0.0
    %1902 = vmatpush2.msra.mxu0 %v1442
    %1903 = vmatprep.subr.mxu0 0.0
    %1904 = vmatpush2.msra.mxu0 %v1437
    %1905 = vmatprep.subr.mxu0 0.0
    %1906 = vmatpush2.msra.mxu0 %v1432
    %1907 = vmatprep.subr.mxu0 0.0
    %1908 = vmatpush2.msra.mxu0 %v1427
    %1909 = vmatprep.subr.mxu0 0.0
    %1910 = vmatpush2.msra.mxu0 %v1422
    %1911 = vmatprep.subr.mxu0 0.0
    %1912 = vmatpush2.msra.mxu0 %v1417
    %1913 = vmatprep.subr.mxu0 0.0
    %1914 = vmatpush2.msra.mxu0 %v1412
    %1915 = vmatprep.subr.mxu0 0.0
    %1916 = vmatpush2.msra.mxu0 %v1407
    %1917 = vmatprep.subr.mxu0 0.0
    %1918 = vmatpush2.msra.mxu0 %v1402
    %1919 = vmatprep.subr.mxu0 0.0
    %1920 = vmatpush2.msra.mxu0 %v1397
    %1921 = vmatprep.subr.mxu0 0.0
    %1922 = vmatpush2.msra.mxu0 %v1392
    %1923 = vmatprep.mubr.f32.mxu0 %v1306
    %1924 = vmatmul.mubr.f32.gmra.mxu0 %v1305
    %v1925 = vpop.f32.mrf.mxu0
    %v1926 = vadd.f32 %v1569, %v1925
    %v1927 = vpop.f32.mrf.mxu0
    %1928 = vdwg.mxu0
    %1929 = vmatprep.subr.mxu0 0.0
    %1930 = vmatpush1.msra.mxu0 %v1547
    %1931 = vmatprep.subr.mxu0 0.0
    %1932 = vmatpush1.msra.mxu0 %v1542
    %1933 = vmatprep.subr.mxu0 0.0
    %1934 = vmatpush1.msra.mxu0 %v1537
    %1935 = vmatprep.subr.mxu0 0.0
    %1936 = vmatpush1.msra.mxu0 %v1532
    %1937 = vmatprep.subr.mxu0 0.0
    %1938 = vmatpush1.msra.mxu0 %v1527
    %1939 = vmatprep.subr.mxu0 0.0
    %1940 = vmatpush1.msra.mxu0 %v1522
    %1941 = vmatprep.subr.mxu0 0.0
    %1942 = vmatpush1.msra.mxu0 %v1517
    %1943 = vmatprep.subr.mxu0 0.0
    %1944 = vmatpush1.msra.mxu0 %v1512
    %1945 = vmatprep.subr.mxu0 0.0
    %1946 = vmatpush1.msra.mxu0 %v1507
    %1947 = vmatprep.subr.mxu0 0.0
    %1948 = vmatpush1.msra.mxu0 %v1502
    %1949 = vmatprep.subr.mxu0 0.0
    %1950 = vmatpush1.msra.mxu0 %v1497
    %1951 = vmatprep.subr.mxu0 0.0
    %1952 = vmatpush1.msra.mxu0 %v1492
    %1953 = vmatprep.subr.mxu0 0.0
    %1954 = vmatpush1.msra.mxu0 %v1487
    %1955 = vmatprep.subr.mxu0 0.0
    %1956 = vmatpush1.msra.mxu0 %v1482
    %1957 = vmatprep.subr.mxu0 0.0
    %1958 = vmatpush1.msra.mxu0 %v1477
    %1959 = vmatprep.subr.mxu0 0.0
    %1960 = vmatpush1.msra.mxu0 %v1472
    %1961 = vmatprep.subr.mxu0 0.0
    %1962 = vmatpush2.msra.mxu0 0.0
    %1963 = vmatprep.subr.mxu0 0.0
    %1964 = vmatpush2.msra.mxu0 0.0
    %1965 = vmatprep.subr.mxu0 0.0
    %1966 = vmatpush2.msra.mxu0 0.0
    %1967 = vmatprep.subr.mxu0 0.0
    %1968 = vmatpush2.msra.mxu0 0.0
    %1969 = vmatprep.subr.mxu0 0.0
    %1970 = vmatpush2.msra.mxu0 0.0
    %1971 = vmatprep.subr.mxu0 0.0
    %1972 = vmatpush2.msra.mxu0 0.0
    %1973 = vmatprep.subr.mxu0 0.0
    %1974 = vmatpush2.msra.mxu0 0.0
    %1975 = vmatprep.subr.mxu0 0.0
    %1976 = vmatpush2.msra.mxu0 0.0
    %1977 = vmatprep.subr.mxu0 0.0
    %1978 = vmatpush2.msra.mxu0 0.0
    %1979 = vmatprep.subr.mxu0 0.0
    %1980 = vmatpush2.msra.mxu0 0.0
    %1981 = vmatprep.subr.mxu0 0.0
    %1982 = vmatpush2.msra.mxu0 0.0
    %1983 = vmatprep.subr.mxu0 0.0
    %1984 = vmatpush2.msra.mxu0 0.0
    %1985 = vmatprep.subr.mxu0 0.0
    %1986 = vmatpush2.msra.mxu0 0.0
    %1987 = vmatprep.subr.mxu0 0.0
    %1988 = vmatpush2.msra.mxu0 0.0
    %1989 = vmatprep.subr.mxu0 0.0
    %1990 = vmatpush2.msra.mxu0 0.0
    %1991 = vmatprep.subr.mxu0 0.0
    %1992 = vmatpush2.msra.mxu0 0.0
    %1993 = vmatprep.mubr.f32.mxu0 0.0
    %1994 = vmatmul.mubr.f32.gmra.mxu0 %v1307
    %v1995 = vpop.f32.mrf.mxu0
    %v1996 = vadd.f32 %v1926, %v1995
    %v1997 = vpop.f32.mrf.mxu0
    %1998 = vdwg.mxu0
    %v2004 = vcombine.low %v1713, %v1715
    %v2005 = vcombine.low %v1855, %v1857
    %v2007 = vunpack.c.l.s4 1983009808
    %v2008 = vunpack.c.0.s8 %v2007
    %v2009 = vlaneseq
    %v2010 = vshrl.u32 %v2009, 7
    %v2011 = vsub.s32 %v2008, %v2010
    %v2012 = vrot.slane %v2004, %v2011
    %v2014 = vunpack.c.l.s4 1983009808
    %v2015 = vunpack.c.0.s8 %v2014
    %v2016 = vlaneseq
    %v2017 = vshrl.u32 %v2016, 7
    %v2018 = vsub.s32 %v2015, %v2017
    %v2019 = vrot.slane %v2005, %v2018
    %v2020 = vcombine.low %v2012, %v2019
    %v2022 = vunpack.c.l.s4 1983009808
    %v2023 = vunpack.c.0.s8 %v2022
    %v2024 = vlaneseq
    %v2025 = vshrl.u32 %v2024, 7
    %v2026 = vsub.s32 %v2023, %v2025
    %v2027 = vrot.slane %v1996, %v2026
    %2030 = vst [vmem:[%s11] sm:$0xff] %v2020
    %2031 = vst [vmem:[%s11 + $0x8] sm:$0x3] %v2027
    // Predicated region
    $region62: #{forward.1} parent=1 // pred_check
      _
    $region63: #{forward.1} parent=1 // pred_check_branch
      %2033 = sbr.rel (0) target = $region65
    $region64: #{forward.1} parent=1 // pred_region
      _
    $region65: #{forward.1} parent=1 // pred_fallthru
      _
    // Predicated region
    $region66: #{forward.1} parent=1 // pred_check
      _
    $region67: #{forward.1} parent=1 // pred_check_branch
      %2035 = sbr.rel (0) target = $region69
    $region68: #{forward.1} parent=1 // pred_region
      _
    $region69: #{forward.1} parent=1 // pred_fallthru
      _
    %2036 = vsyncpa [#allocation3], 1
    %2037 = vsyncpa [#allocation5], 1
    %2038 = vsyncpa [#allocation8], 1

</llo_original>
